<compile_context>
chip_gen: v7x
topology: tpu7x:2x2x1
jax: 0.10.0
libtpu: 0.0.40
codegen_flags: <defaults>
</compile_context>

<pallas_src>
import functools
import math

import jax
import jax.numpy as jnp
from jax import lax
from jax.experimental import pallas as pl
from jax.experimental.pallas import tpu as pltpu


# ----------------------------------------------------------------------------
# Fused MHAtt kernel: per batch-tile, full sequence.
#   q/k/v blocks: (bt, S, H); mask block: (bt, 1, Sk) additive (0 / -1e9) f32
#   weights (H, H) already transposed to (in, out); biases (1, H); all resident.
#   output block: (bt, Sq, H)  -- lane-dense (H multiple of 128 in the demo).
# ----------------------------------------------------------------------------
def _mhatt_fused_kernel(q_ref, k_ref, v_ref, mask_ref,
                        wq_ref, bq_ref, wk_ref, bk_ref,
                        wv_ref, bv_ref, wm_ref, bm_ref,
                        o_ref, *, num_heads, d_k):
    bt, sq, H = q_ref.shape
    sk = k_ref.shape[1]
    scale = jnp.float32(1.0 / math.sqrt(d_k))

    # Resident weights / biases (double-buffered by BlockSpec, same block every step).
    wq = wq_ref[...]; wk = wk_ref[...]; wv = wv_ref[...]; wm = wm_ref[...]
    bq = bq_ref[...]; bk = bk_ref[...]; bv = bv_ref[...]; bm = bm_ref[...]

    # bt is a static block dimension -> this Python loop unrolls at trace time.
    for b in range(bt):
        xq = q_ref[b]                     # (sq, H)
        xk = k_ref[b]                     # (sk, H)
        xv = v_ref[b]                     # (sk, H)
        mrow = mask_ref[b]                # (1, sk) additive mask

        # Q/K/V projections (f32 accumulation on the MXU); fold 1/sqrt(d_k) into Q.
        qp = (jnp.dot(xq, wq, preferred_element_type=jnp.float32) + bq) * scale
        kp = jnp.dot(xk, wk, preferred_element_type=jnp.float32) + bk
        vp = jnp.dot(xv, wv, preferred_element_type=jnp.float32) + bv

        # Per-head attention via lane slices (no in-kernel head reshapes); heads are
        # merged back with a concatenate so the final matmul + store are lane-dense.
        head_outs = []
        for h in range(num_heads):
            lo = h * d_k
            qh = qp[:, lo:lo + d_k]       # (sq, dk)
            kh = kp[:, lo:lo + d_k]       # (sk, dk)
            vh = vp[:, lo:lo + d_k]       # (sk, dk)

            # scores = qh @ kh.T  (contract last dims; scale already folded into qh)
            s = lax.dot_general(qh, kh, (((1,), (1,)), ((), ())),
                                preferred_element_type=jnp.float32)   # (sq, sk)
            s = s + mrow                                               # masked_fill -1e9

            s_max = jnp.max(s, axis=-1, keepdims=True)
            p = jnp.exp(s - s_max)
            denom = jnp.sum(p, axis=-1, keepdims=True)
            att = p * pl.reciprocal(denom, approx=True)                # EUP slot
            # TODO(synk): nn.Dropout on the attention map is identity in eval mode;
            #             training-mode stochastic dropout (pltpu.prng_*) not implemented.

            head_outs.append(jnp.dot(att, vh,
                                     preferred_element_type=jnp.float32))  # (sq, dk)

        merged = jnp.concatenate(head_outs, axis=-1)                   # (sq, H) lane-dense

        # linear_merge, fused in the same kernel.
        out = jnp.dot(merged, wm, preferred_element_type=jnp.float32) + bm
        o_ref[b] = out.astype(o_ref.dtype)


def _pick_batch_tile(B, sq, sk, H, n_heads, budget_bytes=6 << 20):
    """Batch-tile size: fill a modest VMEM budget but keep >=2 grid steps when B>=2."""
    itm = 4
    per_b = itm * (2 * sq * H + 4 * sk * H + 2 * sk          # double-buffered I/O blocks
                   + n_heads * sq * sk + 3 * max(sq, sk) * H)  # rough working set
    bt = max(1, min(B, budget_bytes // max(per_b, 1)))
    if B >= 2:
        bt = min(bt, B // 2)        # >= 2 grid steps: both v7x TensorCores get work
    bt = max(1, bt)
    while B % bt:                   # keep the grid exact (no padding needed)
        bt -= 1
    return bt


def prepare_params(torch_style_params):
    """One-time setup: nn.Linear W (out,in) -> W_t (in,out); bias -> (1,out)."""
    return {name: (jnp.transpose(W), b.reshape(1, -1))
            for name, (W, b) in torch_style_params.items()}


def mhatt_forward(prepared_params, v, k, q, mask_bool, *, multi_head):
    """v,k,q: (B, S, H); mask_bool: (B,1,1,Sk) True where masked. Returns (B, Sq, H)."""
    B, sq, H = q.shape
    sk = k.shape[1]
    d_k = H // multi_head
    bt = _pick_batch_tile(B, sq, sk, H, multi_head)

    # Additive mask (0 where kept, -1e9 where masked), one row per batch element.
    mask_add = jnp.where(mask_bool.reshape(B, 1, sk),
                         jnp.float32(-1e9), jnp.float32(0.0))

    wq, bq = prepared_params["linear_q"]
    wk, bk = prepared_params["linear_k"]
    wv, bv = prepared_params["linear_v"]
    wm, bm = prepared_params["linear_merge"]

    # Explicit VMEM budget (re-derived for v7x's smaller VMEM; tiny at these shapes).
    itm = 4
    blocks = 2 * itm * bt * (2 * sq * H + 2 * sk * H + sk)          # double-buffered I/O
    weights = 2 * itm * 4 * (H * H + H)                              # resident W + b
    work = itm * bt * (multi_head * sq * sk + 4 * max(sq, sk) * H)   # temporaries (rough)
    vmem_limit = int(min(max(2 * (blocks + weights + work), 8 << 20), 64 << 20))

    kernel = functools.partial(_mhatt_fused_kernel,
                               num_heads=multi_head, d_k=d_k)

    out = pl.pallas_call(
        kernel,
        out_shape=jax.ShapeDtypeStruct((B, sq, H), q.dtype),
        grid_spec=pltpu.PrefetchScalarGridSpec(
            num_scalar_prefetch=0,
            grid=(B // bt,),
            in_specs=[
                pl.BlockSpec((bt, sq, H), lambda i: (i, 0, 0)),      # q
                pl.BlockSpec((bt, sk, H), lambda i: (i, 0, 0)),      # k
                pl.BlockSpec((bt, sk, H), lambda i: (i, 0, 0)),      # v
                pl.BlockSpec((bt, 1, sk), lambda i: (i, 0, 0)),      # additive mask
                pl.BlockSpec((H, H), lambda i: (0, 0)),              # Wq (resident)
                pl.BlockSpec((1, H), lambda i: (0, 0)),              # bq
                pl.BlockSpec((H, H), lambda i: (0, 0)),              # Wk
                pl.BlockSpec((1, H), lambda i: (0, 0)),              # bk
                pl.BlockSpec((H, H), lambda i: (0, 0)),              # Wv
                pl.BlockSpec((1, H), lambda i: (0, 0)),              # bv
                pl.BlockSpec((H, H), lambda i: (0, 0)),              # Wmerge
                pl.BlockSpec((1, H), lambda i: (0, 0)),              # bmerge
            ],
            out_specs=pl.BlockSpec((bt, sq, H), lambda i: (i, 0, 0)),
        ),
        compiler_params=pltpu.CompilerParams(
            dimension_semantics=("parallel",),
            vmem_limit_bytes=vmem_limit,
        ),
    )(q, k, v, mask_add, wq, bq, wk, bk, wv, bv, wm, bm)
    return out


# ----------------------------------------------------------------------------
# Pure-JAX reference (torch semantics) + demo
# ----------------------------------------------------------------------------
def _ref_mhatt(params, v, k, q, mask_bool, *, multi_head):
    B, sq, H = q.shape
    d_k = H // multi_head

    def lin(x, name):
        W, b = params[name]
        return x @ W.T + b

    def split(x, name):
        return jnp.transpose(lin(x, name).reshape(B, -1, multi_head, d_k), (0, 2, 1, 3))

    vv = split(v, "linear_v")
    kk = split(k, "linear_k")
    qq = split(q, "linear_q")
    scores = jnp.einsum("bhqd,bhkd->bhqk", qq, kk) / math.sqrt(d_k)
    scores = jnp.where(mask_bool, -1e9, scores)
    att = jax.nn.softmax(scores, axis=-1)
    out = jnp.einsum("bhqk,bhkd->bhqd", att, vv)
    out = jnp.transpose(out, (0, 2, 1, 3)).reshape(B, sq, H)
    return lin(out, "linear_merge")


if __name__ == "__main__":
    B, S, HIDDEN_SIZE, MULTI_HEAD = 2, 16, 128, 4     # small shapes; H lane-dense (128)

    key = jax.random.PRNGKey(0)
    keys = jax.random.split(key, 16)

    def init_linear(kw, kb, fan_in, fan_out):
        bound = 1.0 / math.sqrt(fan_in)
        W = jax.random.uniform(kw, (fan_out, fan_in), jnp.float32, -bound, bound)
        b = jax.random.uniform(kb, (fan_out,), jnp.float32, -bound, bound)
        return W, b

    params = {
        "linear_v": init_linear(keys[0], keys[1], HIDDEN_SIZE, HIDDEN_SIZE),
        "linear_k": init_linear(keys[2], keys[3], HIDDEN_SIZE, HIDDEN_SIZE),
        "linear_q": init_linear(keys[4], keys[5], HIDDEN_SIZE, HIDDEN_SIZE),
        "linear_merge": init_linear(keys[6], keys[7], HIDDEN_SIZE, HIDDEN_SIZE),
    }
    prepared = prepare_params(params)     # one-time weight transpose (not per forward)

    v = jax.random.normal(keys[8], (B, S, HIDDEN_SIZE), dtype=jnp.float32)
    k = jax.random.normal(keys[9], (B, S, HIDDEN_SIZE), dtype=jnp.float32)
    q = jax.random.normal(keys[10], (B, S, HIDDEN_SIZE), dtype=jnp.float32)

    # typical openvqa padding mask: True where key position is padding
    key_pos = jnp.arange(S)
    valid_lens = jnp.array([S, S - 3])
    mask_bool = (key_pos[None, :] >= valid_lens[:, None]).reshape(B, 1, 1, S)

    out = mhatt_forward(prepared, v, k, q, mask_bool, multi_head=MULTI_HEAD)
    out = jax.block_until_ready(out)

    ref = _ref_mhatt(params, v, k, q, mask_bool, multi_head=MULTI_HEAD)
    assert out.shape == (B, S, HIDDEN_SIZE)
    assert jnp.all(jnp.isfinite(out))
    assert jnp.allclose(out, ref, atol=2e-3, rtol=2e-3)

    print("KERNEL_OK")
</pallas_src>

<mosaic_0001>
module attributes {stable_mosaic.version = 11 : i64} {
  func.func @_mhatt_fused_kernel(%arg0: i32, %arg1: memref<1x16x128xf32, #tpu.memory_space<vmem>>, %arg2: memref<1x16x128xf32, #tpu.memory_space<vmem>>, %arg3: memref<1x16x128xf32, #tpu.memory_space<vmem>>, %arg4: memref<1x1x16xf32, #tpu.memory_space<vmem>>, %arg5: memref<128x128xf32, #tpu.memory_space<vmem>>, %arg6: memref<1x128xf32, #tpu.memory_space<vmem>>, %arg7: memref<128x128xf32, #tpu.memory_space<vmem>>, %arg8: memref<1x128xf32, #tpu.memory_space<vmem>>, %arg9: memref<128x128xf32, #tpu.memory_space<vmem>>, %arg10: memref<1x128xf32, #tpu.memory_space<vmem>>, %arg11: memref<128x128xf32, #tpu.memory_space<vmem>>, %arg12: memref<1x128xf32, #tpu.memory_space<vmem>>, %arg13: memref<1x16x128xf32, #tpu.memory_space<vmem>>) attributes {dimension_semantics = [#tpu.dimension_semantics<parallel>], iteration_bounds = array<i64: 2>, scalar_prefetch = 0 : i64, scratch_operands = 0 : i64, tpu.core_type = #tpu.core_type<tc>, window_params = [{transform_indices = @transform_0, window_bounds = array<i64: 1, 16, 128>}, {transform_indices = @transform_1, window_bounds = array<i64: 1, 16, 128>}, {transform_indices = @transform_2, window_bounds = array<i64: 1, 16, 128>}, {transform_indices = @transform_3, window_bounds = array<i64: 1, 1, 16>}, {pipeline_mode = #tpu.pipeline_mode<synchronous>, transform_indices = @transform_4, window_bounds = array<i64: 128, 128>}, {pipeline_mode = #tpu.pipeline_mode<synchronous>, transform_indices = @transform_5, window_bounds = array<i64: 1, 128>}, {pipeline_mode = #tpu.pipeline_mode<synchronous>, transform_indices = @transform_6, window_bounds = array<i64: 128, 128>}, {pipeline_mode = #tpu.pipeline_mode<synchronous>, transform_indices = @transform_7, window_bounds = array<i64: 1, 128>}, {pipeline_mode = #tpu.pipeline_mode<synchronous>, transform_indices = @transform_8, window_bounds = array<i64: 128, 128>}, {pipeline_mode = #tpu.pipeline_mode<synchronous>, transform_indices = @transform_9, window_bounds = array<i64: 1, 128>}, {pipeline_mode = #tpu.pipeline_mode<synchronous>, transform_indices = @transform_10, window_bounds = array<i64: 128, 128>}, {pipeline_mode = #tpu.pipeline_mode<synchronous>, transform_indices = @transform_11, window_bounds = array<i64: 1, 128>}, {transform_indices = @transform_12, window_bounds = array<i64: 1, 16, 128>}]} {
    %c0 = arith.constant 0 : index
    %c0_0 = arith.constant 0 : index
    %0 = vector.load %arg5[%c0, %c0_0] : memref<128x128xf32, #tpu.memory_space<vmem>>, vector<128x128xf32>
    %c0_1 = arith.constant 0 : index
    %c0_2 = arith.constant 0 : index
    %1 = vector.load %arg7[%c0_1, %c0_2] : memref<128x128xf32, #tpu.memory_space<vmem>>, vector<128x128xf32>
    %c0_3 = arith.constant 0 : index
    %c0_4 = arith.constant 0 : index
    %2 = vector.load %arg9[%c0_3, %c0_4] : memref<128x128xf32, #tpu.memory_space<vmem>>, vector<128x128xf32>
    %c0_5 = arith.constant 0 : index
    %c0_6 = arith.constant 0 : index
    %3 = vector.load %arg11[%c0_5, %c0_6] : memref<128x128xf32, #tpu.memory_space<vmem>>, vector<128x128xf32>
    %c0_7 = arith.constant 0 : index
    %c0_8 = arith.constant 0 : index
    %4 = vector.load %arg6[%c0_7, %c0_8] : memref<1x128xf32, #tpu.memory_space<vmem>>, vector<1x128xf32>
    %c0_9 = arith.constant 0 : index
    %c0_10 = arith.constant 0 : index
    %5 = vector.load %arg8[%c0_9, %c0_10] : memref<1x128xf32, #tpu.memory_space<vmem>>, vector<1x128xf32>
    %c0_11 = arith.constant 0 : index
    %c0_12 = arith.constant 0 : index
    %6 = vector.load %arg10[%c0_11, %c0_12] : memref<1x128xf32, #tpu.memory_space<vmem>>, vector<1x128xf32>
    %c0_13 = arith.constant 0 : index
    %c0_14 = arith.constant 0 : index
    %7 = vector.load %arg12[%c0_13, %c0_14] : memref<1x128xf32, #tpu.memory_space<vmem>>, vector<1x128xf32>
    %c0_15 = arith.constant 0 : index
    %c0_16 = arith.constant 0 : index
    %c0_17 = arith.constant 0 : index
    %8 = vector.load %arg1[%c0_15, %c0_16, %c0_17] : memref<1x16x128xf32, #tpu.memory_space<vmem>>, vector<1x16x128xf32>
    %9 = vector.shape_cast %8 : vector<1x16x128xf32> to vector<16x128xf32>
    %c0_18 = arith.constant 0 : index
    %c0_19 = arith.constant 0 : index
    %c0_20 = arith.constant 0 : index
    %10 = vector.load %arg2[%c0_18, %c0_19, %c0_20] : memref<1x16x128xf32, #tpu.memory_space<vmem>>, vector<1x16x128xf32>
    %11 = vector.shape_cast %10 : vector<1x16x128xf32> to vector<16x128xf32>
    %c0_21 = arith.constant 0 : index
    %c0_22 = arith.constant 0 : index
    %c0_23 = arith.constant 0 : index
    %12 = vector.load %arg3[%c0_21, %c0_22, %c0_23] : memref<1x16x128xf32, #tpu.memory_space<vmem>>, vector<1x16x128xf32>
    %13 = vector.shape_cast %12 : vector<1x16x128xf32> to vector<16x128xf32>
    %c0_24 = arith.constant 0 : index
    %c0_25 = arith.constant 0 : index
    %c0_26 = arith.constant 0 : index
    %14 = vector.load %arg4[%c0_24, %c0_25, %c0_26] : memref<1x1x16xf32, #tpu.memory_space<vmem>>, vector<1x1x16xf32>
    %15 = vector.shape_cast %14 : vector<1x1x16xf32> to vector<1x16xf32>
    %cst = arith.constant dense<0.000000e+00> : vector<16x128xf32>
    %16 = tpu.matmul %9, %0, %cst {dimension_numbers = #tpu.dot_dimension_numbers<[1], [0], [0], [1], [0, 0, 1, 1], [], []>} : vector<16x128xf32>, vector<128x128xf32>, vector<16x128xf32> -> vector<16x128xf32>
    %17 = vector.broadcast %4 : vector<1x128xf32> to vector<16x128xf32>
    %18 = arith.addf %16, %17 : vector<16x128xf32>
    %cst_27 = arith.constant 0.176776692 : f32
    %19 = vector.broadcast %cst_27 : f32 to vector<16x128xf32>
    %20 = arith.mulf %18, %19 : vector<16x128xf32>
    %cst_28 = arith.constant dense<0.000000e+00> : vector<16x128xf32>
    %21 = tpu.matmul %11, %1, %cst_28 {dimension_numbers = #tpu.dot_dimension_numbers<[1], [0], [0], [1], [0, 0, 1, 1], [], []>} : vector<16x128xf32>, vector<128x128xf32>, vector<16x128xf32> -> vector<16x128xf32>
    %22 = vector.broadcast %5 : vector<1x128xf32> to vector<16x128xf32>
    %23 = arith.addf %21, %22 : vector<16x128xf32>
    %cst_29 = arith.constant dense<0.000000e+00> : vector<16x128xf32>
    %24 = tpu.matmul %13, %2, %cst_29 {dimension_numbers = #tpu.dot_dimension_numbers<[1], [0], [0], [1], [0, 0, 1, 1], [], []>} : vector<16x128xf32>, vector<128x128xf32>, vector<16x128xf32> -> vector<16x128xf32>
    %25 = vector.broadcast %6 : vector<1x128xf32> to vector<16x128xf32>
    %26 = arith.addf %24, %25 : vector<16x128xf32>
    %27 = vector.extract_strided_slice %20 {offsets = [0, 0], sizes = [16, 32], strides = [1, 1]} : vector<16x128xf32> to vector<16x32xf32>
    %28 = vector.extract_strided_slice %23 {offsets = [0, 0], sizes = [16, 32], strides = [1, 1]} : vector<16x128xf32> to vector<16x32xf32>
    %29 = vector.extract_strided_slice %26 {offsets = [0, 0], sizes = [16, 32], strides = [1, 1]} : vector<16x128xf32> to vector<16x32xf32>
    %cst_30 = arith.constant dense<0.000000e+00> : vector<16x16xf32>
    %30 = tpu.matmul %27, %28, %cst_30 {dimension_numbers = #tpu.dot_dimension_numbers<[1], [1], [0], [0], [0, 0, 1, 0], [], []>} : vector<16x32xf32>, vector<16x32xf32>, vector<16x16xf32> -> vector<16x16xf32>
    %31 = vector.broadcast %15 : vector<1x16xf32> to vector<16x16xf32>
    %32 = arith.addf %30, %31 : vector<16x16xf32>
    %cst_31 = arith.constant dense<0xFF800000> : vector<16xf32>
    %33 = vector.multi_reduction <maximumf>, %32, %cst_31 [1] : vector<16x16xf32> to vector<16xf32>
    %34 = vector.shape_cast %33 : vector<16xf32> to vector<16x1xf32>
    %35 = vector.broadcast %34 : vector<16x1xf32> to vector<16x16xf32>
    %36 = arith.subf %32, %35 : vector<16x16xf32>
    %37 = math.exp %36 : vector<16x16xf32>
    %cst_32 = arith.constant dense<0.000000e+00> : vector<16xf32>
    %38 = vector.multi_reduction <add>, %37, %cst_32 [1] : vector<16x16xf32> to vector<16xf32>
    %39 = vector.shape_cast %38 : vector<16xf32> to vector<16x1xf32>
    %40 = tpu.reciprocal %39 {approx = true} : vector<16x1xf32> -> vector<16x1xf32>
    %41 = vector.broadcast %40 : vector<16x1xf32> to vector<16x16xf32>
    %42 = arith.mulf %37, %41 : vector<16x16xf32>
    %cst_33 = arith.constant dense<0.000000e+00> : vector<16x32xf32>
    %43 = tpu.matmul %42, %29, %cst_33 {dimension_numbers = #tpu.dot_dimension_numbers<[1], [0], [0], [1], [0, 0, 1, 1], [], []>} : vector<16x16xf32>, vector<16x32xf32>, vector<16x32xf32> -> vector<16x32xf32>
    %44 = vector.extract_strided_slice %20 {offsets = [0, 32], sizes = [16, 32], strides = [1, 1]} : vector<16x128xf32> to vector<16x32xf32>
    %45 = vector.extract_strided_slice %23 {offsets = [0, 32], sizes = [16, 32], strides = [1, 1]} : vector<16x128xf32> to vector<16x32xf32>
    %46 = vector.extract_strided_slice %26 {offsets = [0, 32], sizes = [16, 32], strides = [1, 1]} : vector<16x128xf32> to vector<16x32xf32>
    %cst_34 = arith.constant dense<0.000000e+00> : vector<16x16xf32>
    %47 = tpu.matmul %44, %45, %cst_34 {dimension_numbers = #tpu.dot_dimension_numbers<[1], [1], [0], [0], [0, 0, 1, 0], [], []>} : vector<16x32xf32>, vector<16x32xf32>, vector<16x16xf32> -> vector<16x16xf32>
    %48 = vector.broadcast %15 : vector<1x16xf32> to vector<16x16xf32>
    %49 = arith.addf %47, %48 : vector<16x16xf32>
    %cst_35 = arith.constant dense<0xFF800000> : vector<16xf32>
    %50 = vector.multi_reduction <maximumf>, %49, %cst_35 [1] : vector<16x16xf32> to vector<16xf32>
    %51 = vector.shape_cast %50 : vector<16xf32> to vector<16x1xf32>
    %52 = vector.broadcast %51 : vector<16x1xf32> to vector<16x16xf32>
    %53 = arith.subf %49, %52 : vector<16x16xf32>
    %54 = math.exp %53 : vector<16x16xf32>
    %cst_36 = arith.constant dense<0.000000e+00> : vector<16xf32>
    %55 = vector.multi_reduction <add>, %54, %cst_36 [1] : vector<16x16xf32> to vector<16xf32>
    %56 = vector.shape_cast %55 : vector<16xf32> to vector<16x1xf32>
    %57 = tpu.reciprocal %56 {approx = true} : vector<16x1xf32> -> vector<16x1xf32>
    %58 = vector.broadcast %57 : vector<16x1xf32> to vector<16x16xf32>
    %59 = arith.mulf %54, %58 : vector<16x16xf32>
    %cst_37 = arith.constant dense<0.000000e+00> : vector<16x32xf32>
    %60 = tpu.matmul %59, %46, %cst_37 {dimension_numbers = #tpu.dot_dimension_numbers<[1], [0], [0], [1], [0, 0, 1, 1], [], []>} : vector<16x16xf32>, vector<16x32xf32>, vector<16x32xf32> -> vector<16x32xf32>
    %61 = vector.extract_strided_slice %20 {offsets = [0, 64], sizes = [16, 32], strides = [1, 1]} : vector<16x128xf32> to vector<16x32xf32>
    %62 = vector.extract_strided_slice %23 {offsets = [0, 64], sizes = [16, 32], strides = [1, 1]} : vector<16x128xf32> to vector<16x32xf32>
    %63 = vector.extract_strided_slice %26 {offsets = [0, 64], sizes = [16, 32], strides = [1, 1]} : vector<16x128xf32> to vector<16x32xf32>
    %cst_38 = arith.constant dense<0.000000e+00> : vector<16x16xf32>
    %64 = tpu.matmul %61, %62, %cst_38 {dimension_numbers = #tpu.dot_dimension_numbers<[1], [1], [0], [0], [0, 0, 1, 0], [], []>} : vector<16x32xf32>, vector<16x32xf32>, vector<16x16xf32> -> vector<16x16xf32>
    %65 = vector.broadcast %15 : vector<1x16xf32> to vector<16x16xf32>
    %66 = arith.addf %64, %65 : vector<16x16xf32>
    %cst_39 = arith.constant dense<0xFF800000> : vector<16xf32>
    %67 = vector.multi_reduction <maximumf>, %66, %cst_39 [1] : vector<16x16xf32> to vector<16xf32>
    %68 = vector.shape_cast %67 : vector<16xf32> to vector<16x1xf32>
    %69 = vector.broadcast %68 : vector<16x1xf32> to vector<16x16xf32>
    %70 = arith.subf %66, %69 : vector<16x16xf32>
    %71 = math.exp %70 : vector<16x16xf32>
    %cst_40 = arith.constant dense<0.000000e+00> : vector<16xf32>
    %72 = vector.multi_reduction <add>, %71, %cst_40 [1] : vector<16x16xf32> to vector<16xf32>
    %73 = vector.shape_cast %72 : vector<16xf32> to vector<16x1xf32>
    %74 = tpu.reciprocal %73 {approx = true} : vector<16x1xf32> -> vector<16x1xf32>
    %75 = vector.broadcast %74 : vector<16x1xf32> to vector<16x16xf32>
    %76 = arith.mulf %71, %75 : vector<16x16xf32>
    %cst_41 = arith.constant dense<0.000000e+00> : vector<16x32xf32>
    %77 = tpu.matmul %76, %63, %cst_41 {dimension_numbers = #tpu.dot_dimension_numbers<[1], [0], [0], [1], [0, 0, 1, 1], [], []>} : vector<16x16xf32>, vector<16x32xf32>, vector<16x32xf32> -> vector<16x32xf32>
    %78 = vector.extract_strided_slice %20 {offsets = [0, 96], sizes = [16, 32], strides = [1, 1]} : vector<16x128xf32> to vector<16x32xf32>
    %79 = vector.extract_strided_slice %23 {offsets = [0, 96], sizes = [16, 32], strides = [1, 1]} : vector<16x128xf32> to vector<16x32xf32>
    %80 = vector.extract_strided_slice %26 {offsets = [0, 96], sizes = [16, 32], strides = [1, 1]} : vector<16x128xf32> to vector<16x32xf32>
    %cst_42 = arith.constant dense<0.000000e+00> : vector<16x16xf32>
    %81 = tpu.matmul %78, %79, %cst_42 {dimension_numbers = #tpu.dot_dimension_numbers<[1], [1], [0], [0], [0, 0, 1, 0], [], []>} : vector<16x32xf32>, vector<16x32xf32>, vector<16x16xf32> -> vector<16x16xf32>
    %82 = vector.broadcast %15 : vector<1x16xf32> to vector<16x16xf32>
    %83 = arith.addf %81, %82 : vector<16x16xf32>
    %cst_43 = arith.constant dense<0xFF800000> : vector<16xf32>
    %84 = vector.multi_reduction <maximumf>, %83, %cst_43 [1] : vector<16x16xf32> to vector<16xf32>
    %85 = vector.shape_cast %84 : vector<16xf32> to vector<16x1xf32>
    %86 = vector.broadcast %85 : vector<16x1xf32> to vector<16x16xf32>
    %87 = arith.subf %83, %86 : vector<16x16xf32>
    %88 = math.exp %87 : vector<16x16xf32>
    %cst_44 = arith.constant dense<0.000000e+00> : vector<16xf32>
    %89 = vector.multi_reduction <add>, %88, %cst_44 [1] : vector<16x16xf32> to vector<16xf32>
    %90 = vector.shape_cast %89 : vector<16xf32> to vector<16x1xf32>
    %91 = tpu.reciprocal %90 {approx = true} : vector<16x1xf32> -> vector<16x1xf32>
    %92 = vector.broadcast %91 : vector<16x1xf32> to vector<16x16xf32>
    %93 = arith.mulf %88, %92 : vector<16x16xf32>
    %cst_45 = arith.constant dense<0.000000e+00> : vector<16x32xf32>
    %94 = tpu.matmul %93, %80, %cst_45 {dimension_numbers = #tpu.dot_dimension_numbers<[1], [0], [0], [1], [0, 0, 1, 1], [], []>} : vector<16x16xf32>, vector<16x32xf32>, vector<16x32xf32> -> vector<16x32xf32>
    %95 = tpu.concatenate %43, %60, %77, %94 in 1 : vector<16x32xf32>, vector<16x32xf32>, vector<16x32xf32>, vector<16x32xf32> -> vector<16x128xf32>
    %cst_46 = arith.constant dense<0.000000e+00> : vector<16x128xf32>
    %96 = tpu.matmul %95, %3, %cst_46 {dimension_numbers = #tpu.dot_dimension_numbers<[1], [0], [0], [1], [0, 0, 1, 1], [], []>} : vector<16x128xf32>, vector<128x128xf32>, vector<16x128xf32> -> vector<16x128xf32>
    %97 = vector.broadcast %7 : vector<1x128xf32> to vector<16x128xf32>
    %98 = arith.addf %96, %97 : vector<16x128xf32>
    %c0_47 = arith.constant 0 : index
    %c0_48 = arith.constant 0 : index
    %c0_49 = arith.constant 0 : index
    %99 = vector.load %arg13[%c0_47, %c0_48, %c0_49] : memref<1x16x128xf32, #tpu.memory_space<vmem>>, vector<1x16x128xf32>
    %100 = vector.shape_cast %99 : vector<1x16x128xf32> to vector<16x128xf32>
    %101 = vector.shape_cast %98 : vector<16x128xf32> to vector<1x16x128xf32>
    tpu.vector_store %arg13[%c0_47, %c0_48, %c0_49], %101 {strides = array<i32>} : memref<1x16x128xf32, #tpu.memory_space<vmem>>, vector<1x16x128xf32>,
    return
  }
  func.func @transform_0(%arg0: i32) -> (i32, i32, i32) {
    %c0_i32 = arith.constant 0 : i32
    %c0_i32_0 = arith.constant 0 : i32
    %c0_i32_1 = arith.constant 0 : i32
    return %arg0, %c0_i32, %c0_i32_0 : i32, i32, i32
  }
  func.func @transform_1(%arg0: i32) -> (i32, i32, i32) {
    %c0_i32 = arith.constant 0 : i32
    %c0_i32_0 = arith.constant 0 : i32
    %c0_i32_1 = arith.constant 0 : i32
    return %arg0, %c0_i32, %c0_i32_0 : i32, i32, i32
  }
  func.func @transform_2(%arg0: i32) -> (i32, i32, i32) {
    %c0_i32 = arith.constant 0 : i32
    %c0_i32_0 = arith.constant 0 : i32
    %c0_i32_1 = arith.constant 0 : i32
    return %arg0, %c0_i32, %c0_i32_0 : i32, i32, i32
  }
  func.func @transform_3(%arg0: i32) -> (i32, i32, i32) {
    %c0_i32 = arith.constant 0 : i32
    %c0_i32_0 = arith.constant 0 : i32
    %c0_i32_1 = arith.constant 0 : i32
    return %arg0, %c0_i32, %c0_i32_0 : i32, i32, i32
  }
  func.func @transform_4(%arg0: i32) -> (i32, i32) {
    %c0_i32 = arith.constant 0 : i32
    %c0_i32_0 = arith.constant 0 : i32
    %c0_i32_1 = arith.constant 0 : i32
    return %c0_i32, %c0_i32_0 : i32, i32
  }
  func.func @transform_5(%arg0: i32) -> (i32, i32) {
    %c0_i32 = arith.constant 0 : i32
    %c0_i32_0 = arith.constant 0 : i32
    %c0_i32_1 = arith.constant 0 : i32
    return %c0_i32, %c0_i32_0 : i32, i32
  }
  func.func @transform_6(%arg0: i32) -> (i32, i32) {
    %c0_i32 = arith.constant 0 : i32
    %c0_i32_0 = arith.constant 0 : i32
    %c0_i32_1 = arith.constant 0 : i32
    return %c0_i32, %c0_i32_0 : i32, i32
  }
  func.func @transform_7(%arg0: i32) -> (i32, i32) {
    %c0_i32 = arith.constant 0 : i32
    %c0_i32_0 = arith.constant 0 : i32
    %c0_i32_1 = arith.constant 0 : i32
    return %c0_i32, %c0_i32_0 : i32, i32
  }
  func.func @transform_8(%arg0: i32) -> (i32, i32) {
    %c0_i32 = arith.constant 0 : i32
    %c0_i32_0 = arith.constant 0 : i32
    %c0_i32_1 = arith.constant 0 : i32
    return %c0_i32, %c0_i32_0 : i32, i32
  }
  func.func @transform_9(%arg0: i32) -> (i32, i32) {
    %c0_i32 = arith.constant 0 : i32
    %c0_i32_0 = arith.constant 0 : i32
    %c0_i32_1 = arith.constant 0 : i32
    return %c0_i32, %c0_i32_0 : i32, i32
  }
  func.func @transform_10(%arg0: i32) -> (i32, i32) {
    %c0_i32 = arith.constant 0 : i32
    %c0_i32_0 = arith.constant 0 : i32
    %c0_i32_1 = arith.constant 0 : i32
    return %c0_i32, %c0_i32_0 : i32, i32
  }
  func.func @transform_11(%arg0: i32) -> (i32, i32) {
    %c0_i32 = arith.constant 0 : i32
    %c0_i32_0 = arith.constant 0 : i32
    %c0_i32_1 = arith.constant 0 : i32
    return %c0_i32, %c0_i32_0 : i32, i32
  }
  func.func @transform_12(%arg0: i32) -> (i32, i32, i32) {
    %c0_i32 = arith.constant 0 : i32
    %c0_i32_0 = arith.constant 0 : i32
    %c0_i32_1 = arith.constant 0 : i32
    return %arg0, %c0_i32, %c0_i32_0 : i32, i32, i32
  }
}

</mosaic_0001>

<llo_original>
// kernel: tpu_custom_call.1
$region0: #{tpu_custom_call.1}
  #allocation0 [shape = 'u32[]', space=smem, size = 0x4, offset = 0x4, fixed_abs, tag = 'smem constant byte address 0x4 - core index']
  #allocation1 [shape = 'u32[144,128]{1,0:T(1,128)}', space=vmem, size = 0x12000, scoped, tag = 'internal scratch']
  %s0 = inlined_call_operand.hbm [shape: f32[2,16,128], index: 0, kind: input, shape index: {}]
  %s1 = inlined_call_operand.hbm [shape: f32[2,16,128], index: 1, kind: input, shape index: {}]
  %s2 = inlined_call_operand.hbm [shape: f32[2,16,128], index: 2, kind: input, shape index: {}]
  %s3 = inlined_call_operand.vmem [shape: f32[2,1,16], index: 3, kind: input, shape index: {}]
  %s4 = inlined_call_operand.hbm [shape: f32[128,128], index: 4, kind: input, shape index: {}]
  %s5 = inlined_call_operand.vmem [shape: f32[1,128], index: 5, kind: input, shape index: {}]
  %s6 = inlined_call_operand.hbm [shape: f32[128,128], index: 6, kind: input, shape index: {}]
  %s7 = inlined_call_operand.vmem [shape: f32[1,128], index: 7, kind: input, shape index: {}]
  %s8 = inlined_call_operand.hbm [shape: f32[128,128], index: 8, kind: input, shape index: {}]
  %s9 = inlined_call_operand.vmem [shape: f32[1,128], index: 9, kind: input, shape index: {}]
  %s10 = inlined_call_operand.hbm [shape: f32[128,128], index: 10, kind: input, shape index: {}]
  %s11 = inlined_call_operand.vmem [shape: f32[1,128], index: 11, kind: input, shape index: {}]
  %s12 = inlined_call_operand.hbm [shape: f32[2,16,128], index: 12, kind: output, shape index: {}]
  %s13 = sld [smem:[#allocation0]]
  $region109: #{tpu_custom_call.1} parent=0
    _
  %s15 = ssub.s32 1, %s13
  %s16 = scalar_select 0, %s15, %s13
  $region1: #{tpu_custom_call.1} parent=0
    #allocation2 [shape = 'u8[16384]{0}', space=vmem, size = 0x4000, scoped, tag = 'input window, operand 0']
    #allocation3 [shape = 's32[2]{0}', space=sflag, size = 0x8, scoped, tag = 'scoped memory for tpu_custom_call.1']
    #allocation4 [shape = 's32[2]{0}', space=sflag, size = 0x8, scoped, tag = 'scoped memory for tpu_custom_call.1']
    #allocation5 [shape = 'u8[16384]{0}', space=vmem, size = 0x4000, scoped, tag = 'input window, operand 1']
    #allocation6 [shape = 's32[2]{0}', space=sflag, size = 0x8, scoped, tag = 'scoped memory for tpu_custom_call.1']
    #allocation7 [shape = 'u8[16384]{0}', space=vmem, size = 0x4000, scoped, tag = 'input window, operand 2']
    #allocation8 [shape = 'u8[65536]{0}', space=vmem, size = 0x10000, scoped, tag = 'input window, operand 4, single buffered']
    #allocation9 [shape = 's32[1]{0}', space=sflag, size = 0x4, scoped, tag = 'scoped memory for tpu_custom_call.1']
    #allocation10 [shape = 'u8[65536]{0}', space=vmem, size = 0x10000, scoped, tag = 'input window, operand 6, single buffered']
    #allocation11 [shape = 'u8[65536]{0}', space=vmem, size = 0x10000, scoped, tag = 'input window, operand 8, single buffered']
    #allocation12 [shape = 's32[1]{0}', space=sflag, size = 0x4, scoped, tag = 'scoped memory for tpu_custom_call.1']
    #allocation13 [shape = 'u8[65536]{0}', space=vmem, size = 0x10000, scoped, tag = 'input window, operand 10, single buffered']
    #allocation14 [shape = 'u8[16384]{0}', space=vmem, size = 0x4000, scoped, tag = 'output window, operand 0']
    %17 = vsyncpa [#allocation3], 0
    %s18 = scalar_lea.sflag [#allocation3], 1
    %19 = vsyncpa %s18, 0
    %20 = vsyncpa [#allocation6], 0
    %s21 = scalar_lea.sflag [#allocation6], 1
    %22 = vsyncpa %s21, 0
    %23 = vsyncpa [#allocation9], 0
    %24 = vsyncpa [#allocation12], 0
    %25 = vsyncpa [#allocation4], 0
    %s26 = scalar_lea.sflag [#allocation4], 1
    %27 = vsyncpa %s26, 0
    loop: start=0, step=1, limit=4
    $region2: #{tpu_custom_call.1} parent=1 // loop_pre_header
      _
    $region3: #{tpu_custom_call.1} parent=1 // loop_header
      %s29 = sphi 0, %s33
      %p30 = scmp.ge.s32.totalorder %s29, 4
      %s39 = sphi 0, %s41
      %s42 = sphi 0, %s39
      %s43 = sphi 0, %s42
      %s59 = sphi 0, %s43
      %s65 = sphi 0, %s67
      %s68 = sphi 0, %s65
      %s69 = sphi 0, %s68
      %s85 = sphi 0, %s69
      %s91 = sphi 0, %s93
      %s94 = sphi 0, %s91
      %s95 = sphi 0, %s94
      %s111 = sphi 0, %s95
      %s117 = sphi 0, %s119
      %s120 = sphi 0, %s117
      %s121 = sphi 0, %s120
      %s137 = sphi 0, %s121
      %s141 = sphi 0, %s141
      %s143 = sphi 0, %s141
      %s144 = sphi 0, %s143
      %s158 = sphi 0, %s144
      %s162 = sphi 0, %s162
      %s164 = sphi 0, %s162
      %s165 = sphi 0, %s164
      %s179 = sphi 0, %s165
      %s183 = sphi 0, %s183
      %s185 = sphi 0, %s183
      %s186 = sphi 0, %s185
      %s200 = sphi 0, %s186
      %s204 = sphi 0, %s204
      %s206 = sphi 0, %s204
      %s207 = sphi 0, %s206
      %s221 = sphi 0, %s207
      %s225 = sphi 0, %s225
      %s227 = sphi 0, %s225
      %s228 = sphi 0, %s227
      %s242 = sphi 0, %s228
      %s246 = sphi 0, %s246
      %s248 = sphi 0, %s246
      %s249 = sphi 0, %s248
      %s263 = sphi 0, %s249
      %s267 = sphi 0, %s267
      %s269 = sphi 0, %s267
      %s270 = sphi 0, %s269
      %s284 = sphi 0, %s270
      %s288 = sphi 0, %s288
      %s290 = sphi 0, %s288
      %s291 = sphi 0, %s290
      %s305 = sphi 0, %s291
      %s311 = sphi 0, %s313
      %s314 = sphi 0, %s311
      %s315 = sphi 0, %s314
      %s331 = sphi 0, %s315
    $region4: #{tpu_custom_call.1} parent=1 // loop_header_branch
      %32 = sbr.rel (%p30) target = $region8
    $region5: #{tpu_custom_call.1} parent=1 // loop_body
      %s34 = ssub.s32 %s29, 1
      %s35 = ssub.s32 %s29, 2
      %s36 = sadd.s32 %s29, 1
      %s37 = ssub.s32 %s29, %s36
      %p38 = scmp.eq.s32.totalorder %s37, 0
      %s40 = sadd.s32 %s39, 1
      %s41 = scalar_select %p38, %s39, %s40
      %p44 = pneg %p38
      %p45 = scmp.eq.s32.totalorder %s29, 1
      %p46 = por %p44, %p45
      %p47 = scmp.ne.s32.totalorder %s39, %s42
      %p48 = scmp.eq.s32.totalorder %s29, 0
      %p49 = por %p47, %p48
      %p50 = scmp.ne.s32.totalorder %s39, %s42
      %p51 = scmp.eq.s32.totalorder %s34, 1
      %p52 = por %p50, %p51
      %p53 = scmp.ne.s32.totalorder %s42, %s43
      %p54 = scmp.eq.s32.totalorder %s34, 0
      %p55 = por %p53, %p54
      %p56 = scmp.ne.s32.totalorder %s42, %s43
      %p57 = scmp.eq.s32.totalorder %s35, 1
      %p58 = por %p56, %p57
      %p60 = scmp.ne.s32.totalorder %s43, %s59
      %p61 = scmp.eq.s32.totalorder %s35, 0
      %p62 = por %p60, %p61
      %s63 = ssub.s32 %s29, %s36
      %p64 = scmp.eq.s32.totalorder %s63, 0
      %s66 = sadd.s32 %s65, 1
      %s67 = scalar_select %p64, %s65, %s66
      %p70 = pneg %p64
      %p71 = scmp.eq.s32.totalorder %s29, 1
      %p72 = por %p70, %p71
      %p73 = scmp.ne.s32.totalorder %s65, %s68
      %p74 = scmp.eq.s32.totalorder %s29, 0
      %p75 = por %p73, %p74
      %p76 = scmp.ne.s32.totalorder %s65, %s68
      %p77 = scmp.eq.s32.totalorder %s34, 1
      %p78 = por %p76, %p77
      %p79 = scmp.ne.s32.totalorder %s68, %s69
      %p80 = scmp.eq.s32.totalorder %s34, 0
      %p81 = por %p79, %p80
      %p82 = scmp.ne.s32.totalorder %s68, %s69
      %p83 = scmp.eq.s32.totalorder %s35, 1
      %p84 = por %p82, %p83
      %p86 = scmp.ne.s32.totalorder %s69, %s85
      %p87 = scmp.eq.s32.totalorder %s35, 0
      %p88 = por %p86, %p87
      %s89 = ssub.s32 %s29, %s36
      %p90 = scmp.eq.s32.totalorder %s89, 0
      %s92 = sadd.s32 %s91, 1
      %s93 = scalar_select %p90, %s91, %s92
      %p96 = pneg %p90
      %p97 = scmp.eq.s32.totalorder %s29, 1
      %p98 = por %p96, %p97
      %p99 = scmp.ne.s32.totalorder %s91, %s94
      %p100 = scmp.eq.s32.totalorder %s29, 0
      %p101 = por %p99, %p100
      %p102 = scmp.ne.s32.totalorder %s91, %s94
      %p103 = scmp.eq.s32.totalorder %s34, 1
      %p104 = por %p102, %p103
      %p105 = scmp.ne.s32.totalorder %s94, %s95
      %p106 = scmp.eq.s32.totalorder %s34, 0
      %p107 = por %p105, %p106
      %p108 = scmp.ne.s32.totalorder %s94, %s95
      %p109 = scmp.eq.s32.totalorder %s35, 1
      %p110 = por %p108, %p109
      %p112 = scmp.ne.s32.totalorder %s95, %s111
      %p113 = scmp.eq.s32.totalorder %s35, 0
      %p114 = por %p112, %p113
      %s115 = ssub.s32 %s29, %s36
      %p116 = scmp.eq.s32.totalorder %s115, 0
      %s118 = sadd.s32 %s117, 1
      %s119 = scalar_select %p116, %s117, %s118
      %p122 = pneg %p116
      %p123 = scmp.eq.s32.totalorder %s29, 1
      %p124 = por %p122, %p123
      %p125 = scmp.ne.s32.totalorder %s117, %s120
      %p126 = scmp.eq.s32.totalorder %s29, 0
      %p127 = por %p125, %p126
      %p128 = scmp.ne.s32.totalorder %s117, %s120
      %p129 = scmp.eq.s32.totalorder %s34, 1
      %p130 = por %p128, %p129
      %p131 = scmp.ne.s32.totalorder %s120, %s121
      %p132 = scmp.eq.s32.totalorder %s34, 0
      %p133 = por %p131, %p132
      %p134 = scmp.ne.s32.totalorder %s120, %s121
      %p135 = scmp.eq.s32.totalorder %s35, 1
      %p136 = por %p134, %p135
      %p138 = scmp.ne.s32.totalorder %s121, %s137
      %p139 = scmp.eq.s32.totalorder %s35, 0
      %p140 = por %p138, %p139
      %s142 = sadd.s32 %s141, 1
      %p145 = scmp.eq.s32.totalorder %s29, 1
      %p146 = scmp.ne.s32.totalorder %s141, %s143
      %p147 = scmp.eq.s32.totalorder %s29, 0
      %p148 = por %p146, %p147
      %p149 = scmp.ne.s32.totalorder %s141, %s143
      %p150 = scmp.eq.s32.totalorder %s34, 1
      %p151 = por %p149, %p150
      %p152 = scmp.ne.s32.totalorder %s143, %s144
      %p153 = scmp.eq.s32.totalorder %s34, 0
      %p154 = por %p152, %p153
      %p155 = scmp.ne.s32.totalorder %s143, %s144
      %p156 = scmp.eq.s32.totalorder %s35, 1
      %p157 = por %p155, %p156
      %p159 = scmp.ne.s32.totalorder %s144, %s158
      %p160 = scmp.eq.s32.totalorder %s35, 0
      %p161 = por %p159, %p160
      %s163 = sadd.s32 %s162, 1
      %p166 = scmp.eq.s32.totalorder %s29, 1
      %p167 = scmp.ne.s32.totalorder %s162, %s164
      %p168 = scmp.eq.s32.totalorder %s29, 0
      %p169 = por %p167, %p168
      %p170 = scmp.ne.s32.totalorder %s162, %s164
      %p171 = scmp.eq.s32.totalorder %s34, 1
      %p172 = por %p170, %p171
      %p173 = scmp.ne.s32.totalorder %s164, %s165
      %p174 = scmp.eq.s32.totalorder %s34, 0
      %p175 = por %p173, %p174
      %p176 = scmp.ne.s32.totalorder %s164, %s165
      %p177 = scmp.eq.s32.totalorder %s35, 1
      %p178 = por %p176, %p177
      %p180 = scmp.ne.s32.totalorder %s165, %s179
      %p181 = scmp.eq.s32.totalorder %s35, 0
      %p182 = por %p180, %p181
      %s184 = sadd.s32 %s183, 1
      %p187 = scmp.eq.s32.totalorder %s29, 1
      %p188 = scmp.ne.s32.totalorder %s183, %s185
      %p189 = scmp.eq.s32.totalorder %s29, 0
      %p190 = por %p188, %p189
      %p191 = scmp.ne.s32.totalorder %s183, %s185
      %p192 = scmp.eq.s32.totalorder %s34, 1
      %p193 = por %p191, %p192
      %p194 = scmp.ne.s32.totalorder %s185, %s186
      %p195 = scmp.eq.s32.totalorder %s34, 0
      %p196 = por %p194, %p195
      %p197 = scmp.ne.s32.totalorder %s185, %s186
      %p198 = scmp.eq.s32.totalorder %s35, 1
      %p199 = por %p197, %p198
      %p201 = scmp.ne.s32.totalorder %s186, %s200
      %p202 = scmp.eq.s32.totalorder %s35, 0
      %p203 = por %p201, %p202
      %s205 = sadd.s32 %s204, 1
      %p208 = scmp.eq.s32.totalorder %s29, 1
      %p209 = scmp.ne.s32.totalorder %s204, %s206
      %p210 = scmp.eq.s32.totalorder %s29, 0
      %p211 = por %p209, %p210
      %p212 = scmp.ne.s32.totalorder %s204, %s206
      %p213 = scmp.eq.s32.totalorder %s34, 1
      %p214 = por %p212, %p213
      %p215 = scmp.ne.s32.totalorder %s206, %s207
      %p216 = scmp.eq.s32.totalorder %s34, 0
      %p217 = por %p215, %p216
      %p218 = scmp.ne.s32.totalorder %s206, %s207
      %p219 = scmp.eq.s32.totalorder %s35, 1
      %p220 = por %p218, %p219
      %p222 = scmp.ne.s32.totalorder %s207, %s221
      %p223 = scmp.eq.s32.totalorder %s35, 0
      %p224 = por %p222, %p223
      %s226 = sadd.s32 %s225, 1
      %p229 = scmp.eq.s32.totalorder %s29, 1
      %p230 = scmp.ne.s32.totalorder %s225, %s227
      %p231 = scmp.eq.s32.totalorder %s29, 0
      %p232 = por %p230, %p231
      %p233 = scmp.ne.s32.totalorder %s225, %s227
      %p234 = scmp.eq.s32.totalorder %s34, 1
      %p235 = por %p233, %p234
      %p236 = scmp.ne.s32.totalorder %s227, %s228
      %p237 = scmp.eq.s32.totalorder %s34, 0
      %p238 = por %p236, %p237
      %p239 = scmp.ne.s32.totalorder %s227, %s228
      %p240 = scmp.eq.s32.totalorder %s35, 1
      %p241 = por %p239, %p240
      %p243 = scmp.ne.s32.totalorder %s228, %s242
      %p244 = scmp.eq.s32.totalorder %s35, 0
      %p245 = por %p243, %p244
      %s247 = sadd.s32 %s246, 1
      %p250 = scmp.eq.s32.totalorder %s29, 1
      %p251 = scmp.ne.s32.totalorder %s246, %s248
      %p252 = scmp.eq.s32.totalorder %s29, 0
      %p253 = por %p251, %p252
      %p254 = scmp.ne.s32.totalorder %s246, %s248
      %p255 = scmp.eq.s32.totalorder %s34, 1
      %p256 = por %p254, %p255
      %p257 = scmp.ne.s32.totalorder %s248, %s249
      %p258 = scmp.eq.s32.totalorder %s34, 0
      %p259 = por %p257, %p258
      %p260 = scmp.ne.s32.totalorder %s248, %s249
      %p261 = scmp.eq.s32.totalorder %s35, 1
      %p262 = por %p260, %p261
      %p264 = scmp.ne.s32.totalorder %s249, %s263
      %p265 = scmp.eq.s32.totalorder %s35, 0
      %p266 = por %p264, %p265
      %s268 = sadd.s32 %s267, 1
      %p271 = scmp.eq.s32.totalorder %s29, 1
      %p272 = scmp.ne.s32.totalorder %s267, %s269
      %p273 = scmp.eq.s32.totalorder %s29, 0
      %p274 = por %p272, %p273
      %p275 = scmp.ne.s32.totalorder %s267, %s269
      %p276 = scmp.eq.s32.totalorder %s34, 1
      %p277 = por %p275, %p276
      %p278 = scmp.ne.s32.totalorder %s269, %s270
      %p279 = scmp.eq.s32.totalorder %s34, 0
      %p280 = por %p278, %p279
      %p281 = scmp.ne.s32.totalorder %s269, %s270
      %p282 = scmp.eq.s32.totalorder %s35, 1
      %p283 = por %p281, %p282
      %p285 = scmp.ne.s32.totalorder %s270, %s284
      %p286 = scmp.eq.s32.totalorder %s35, 0
      %p287 = por %p285, %p286
      %s289 = sadd.s32 %s288, 1
      %p292 = scmp.eq.s32.totalorder %s29, 1
      %p293 = scmp.ne.s32.totalorder %s288, %s290
      %p294 = scmp.eq.s32.totalorder %s29, 0
      %p295 = por %p293, %p294
      %p296 = scmp.ne.s32.totalorder %s288, %s290
      %p297 = scmp.eq.s32.totalorder %s34, 1
      %p298 = por %p296, %p297
      %p299 = scmp.ne.s32.totalorder %s290, %s291
      %p300 = scmp.eq.s32.totalorder %s34, 0
      %p301 = por %p299, %p300
      %p302 = scmp.ne.s32.totalorder %s290, %s291
      %p303 = scmp.eq.s32.totalorder %s35, 1
      %p304 = por %p302, %p303
      %p306 = scmp.ne.s32.totalorder %s291, %s305
      %p307 = scmp.eq.s32.totalorder %s35, 0
      %p308 = por %p306, %p307
      %s309 = ssub.s32 %s29, %s36
      %p310 = scmp.eq.s32.totalorder %s309, 0
      %s312 = sadd.s32 %s311, 1
      %s313 = scalar_select %p310, %s311, %s312
      %p316 = pneg %p310
      %p317 = scmp.eq.s32.totalorder %s29, 1
      %p318 = por %p316, %p317
      %p319 = scmp.ne.s32.totalorder %s311, %s314
      %p320 = scmp.eq.s32.totalorder %s29, 0
      %p321 = por %p319, %p320
      %p322 = scmp.ne.s32.totalorder %s311, %s314
      %p323 = scmp.eq.s32.totalorder %s34, 1
      %p324 = por %p322, %p323
      %p325 = scmp.ne.s32.totalorder %s314, %s315
      %p326 = scmp.eq.s32.totalorder %s34, 0
      %p327 = por %p325, %p326
      %p328 = scmp.ne.s32.totalorder %s314, %s315
      %p329 = scmp.eq.s32.totalorder %s35, 1
      %p330 = por %p328, %p329
      %p332 = scmp.ne.s32.totalorder %s315, %s331
      %p333 = scmp.eq.s32.totalorder %s35, 0
      %p334 = por %p332, %p333
      %p335 = scmp.le.s32.totalorder 1, %s29
      %p336 = scmp.lt.s32.totalorder %s29, 3
      %p337 = pnand %p335, %p336
      %p338 = pneg %p337
      // Predicated region
      $region9: #{tpu_custom_call.1} parent=5 // pred_check
        _
      $region10: #{tpu_custom_call.1} parent=5 // pred_check_branch
        %340 = sbr.rel (%p337) target = $region12
      $region11: #{tpu_custom_call.1} parent=5 // pred_region
        %s341 = ssub.s32 %s29, 1
        // Predicated region
        $region13: #{tpu_custom_call.1} parent=11 // pred_check
          %p342 = pneg %p154
        $region14: #{tpu_custom_call.1} parent=11 // pred_check_branch
          %344 = sbr.rel (%p342) target = $region16
        $region15: #{tpu_custom_call.1} parent=11 // pred_region
          %s346 = ssub.s32 2048, 2048
          %347 = vsyncadd [#allocation9], %s346
          %s348 = sshll.u32 [#allocation8], 4
          %s349 = int_to_ptr.vmem [resolvable:$true] %s348
          %354 = dma.hbm_to_vmem [thread:$0]  %s4, 2048, %s349, [#allocation9], 128, 128, 8
        $region16: #{tpu_custom_call.1} parent=11 // pred_fallthru
          _
        // Predicated region
        $region17: #{tpu_custom_call.1} parent=11 // pred_check
          %p355 = pneg %p175
        $region18: #{tpu_custom_call.1} parent=11 // pred_check_branch
          %357 = sbr.rel (%p355) target = $region20
        $region19: #{tpu_custom_call.1} parent=11 // pred_region
          _
        $region20: #{tpu_custom_call.1} parent=11 // pred_fallthru
          _
        // Predicated region
        $region21: #{tpu_custom_call.1} parent=11 // pred_check
          %p358 = pneg %p196
        $region22: #{tpu_custom_call.1} parent=11 // pred_check_branch
          %360 = sbr.rel (%p358) target = $region24
        $region23: #{tpu_custom_call.1} parent=11 // pred_region
          %s362 = ssub.s32 2048, 2048
          %363 = vsyncadd [#allocation9], %s362
          %s364 = sshll.u32 [#allocation10], 4
          %s365 = int_to_ptr.vmem [resolvable:$true] %s364
          %370 = dma.hbm_to_vmem [thread:$0]  %s6, 2048, %s365, [#allocation9], 128, 128, 8
        $region24: #{tpu_custom_call.1} parent=11 // pred_fallthru
          _
        // Predicated region
        $region25: #{tpu_custom_call.1} parent=11 // pred_check
          %p371 = pneg %p217
        $region26: #{tpu_custom_call.1} parent=11 // pred_check_branch
          %373 = sbr.rel (%p371) target = $region28
        $region27: #{tpu_custom_call.1} parent=11 // pred_region
          _
        $region28: #{tpu_custom_call.1} parent=11 // pred_fallthru
          _
        // Predicated region
        $region29: #{tpu_custom_call.1} parent=11 // pred_check
          %p374 = pneg %p238
        $region30: #{tpu_custom_call.1} parent=11 // pred_check_branch
          %376 = sbr.rel (%p374) target = $region32
        $region31: #{tpu_custom_call.1} parent=11 // pred_region
          %s378 = ssub.s32 2048, 2048
          %379 = vsyncadd [#allocation12], %s378
          %s380 = sshll.u32 [#allocation11], 4
          %s381 = int_to_ptr.vmem [resolvable:$true] %s380
          %386 = dma.hbm_to_vmem [thread:$0]  %s8, 2048, %s381, [#allocation12], 128, 128, 8
        $region32: #{tpu_custom_call.1} parent=11 // pred_fallthru
          _
        // Predicated region
        $region33: #{tpu_custom_call.1} parent=11 // pred_check
          %p387 = pneg %p259
        $region34: #{tpu_custom_call.1} parent=11 // pred_check_branch
          %389 = sbr.rel (%p387) target = $region36
        $region35: #{tpu_custom_call.1} parent=11 // pred_region
          _
        $region36: #{tpu_custom_call.1} parent=11 // pred_fallthru
          _
        // Predicated region
        $region37: #{tpu_custom_call.1} parent=11 // pred_check
          %p390 = pneg %p280
        $region38: #{tpu_custom_call.1} parent=11 // pred_check_branch
          %392 = sbr.rel (%p390) target = $region40
        $region39: #{tpu_custom_call.1} parent=11 // pred_region
          %s394 = ssub.s32 2048, 2048
          %395 = vsyncadd [#allocation12], %s394
          %s396 = sshll.u32 [#allocation13], 4
          %s397 = int_to_ptr.vmem [resolvable:$true] %s396
          %402 = dma.hbm_to_vmem [thread:$0]  %s10, 2048, %s397, [#allocation12], 128, 128, 8
        $region40: #{tpu_custom_call.1} parent=11 // pred_fallthru
          _
        // Predicated region
        $region41: #{tpu_custom_call.1} parent=11 // pred_check
          %p403 = pneg %p301
        $region42: #{tpu_custom_call.1} parent=11 // pred_check_branch
          %405 = sbr.rel (%p403) target = $region44
        $region43: #{tpu_custom_call.1} parent=11 // pred_region
          _
        $region44: #{tpu_custom_call.1} parent=11 // pred_fallthru
          _
      $region12: #{tpu_custom_call.1} parent=5 // pred_fallthru
        _
      %p406 = scmp.lt.s32.totalorder %s29, 2
      // Predicated region
      $region45: #{tpu_custom_call.1} parent=5 // pred_check
        %p407 = pneg %p406
      $region46: #{tpu_custom_call.1} parent=5 // pred_check_branch
        %409 = sbr.rel (%p407) target = $region48
      $region47: #{tpu_custom_call.1} parent=5 // pred_region
        // Predicated region
        $region49: #{tpu_custom_call.1} parent=47 // pred_check
          %p410 = pneg %p49
        $region50: #{tpu_custom_call.1} parent=47 // pred_check_branch
          %412 = sbr.rel (%p410) target = $region52
        $region51: #{tpu_custom_call.1} parent=47 // pred_region
          %s413 = sand.u32 %s39, 1
          %s414 = scalar_lea.sflag [#allocation3], %s413
          %s415 = sand.u32 %s39, 1
          %s416 = smul.addr %s415, 16
          %s417 = scalar_lea.vmem [#allocation2], %s416
          %s419 = ssub.s32 256, 256
          %420 = vsyncadd %s414, %s419
          %s421 = smul.addr %s29, 2
          %s422 = smul.addr %s421, 128
          %s423 = scalar_lea.hbm %s0, %s422
          %s424 = sshll.u32 %s417, 4
          %s425 = int_to_ptr.vmem [resolvable:$true] %s424
          %430 = dma.hbm_to_vmem [thread:$0]  %s423, 256, %s425, %s414, 128, 128, 8
        $region52: #{tpu_custom_call.1} parent=47 // pred_fallthru
          _
        // Predicated region
        $region53: #{tpu_custom_call.1} parent=47 // pred_check
          %p431 = pneg %p75
        $region54: #{tpu_custom_call.1} parent=47 // pred_check_branch
          %433 = sbr.rel (%p431) target = $region56
        $region55: #{tpu_custom_call.1} parent=47 // pred_region
          %s434 = sand.u32 %s29, 1
          %s435 = scalar_lea.sflag [#allocation6], %s434
          %s436 = sand.u32 %s65, 1
          %s437 = smul.addr %s436, 16
          %s438 = scalar_lea.vmem [#allocation5], %s437
          %s440 = ssub.s32 256, 256
          %441 = vsyncadd %s435, %s440
          %s442 = smul.addr %s29, 2
          %s443 = smul.addr %s442, 128
          %s444 = scalar_lea.hbm %s1, %s443
          %s445 = sshll.u32 %s438, 4
          %s446 = int_to_ptr.vmem [resolvable:$true] %s445
          %451 = dma.hbm_to_vmem [thread:$0]  %s444, 256, %s446, %s435, 128, 128, 8
        $region56: #{tpu_custom_call.1} parent=47 // pred_fallthru
          _
        // Predicated region
        $region57: #{tpu_custom_call.1} parent=47 // pred_check
          %p452 = pneg %p101
        $region58: #{tpu_custom_call.1} parent=47 // pred_check_branch
          %454 = sbr.rel (%p452) target = $region60
        $region59: #{tpu_custom_call.1} parent=47 // pred_region
          %s455 = sand.u32 %s29, 1
          %s456 = scalar_lea.sflag [#allocation6], %s455
          %s457 = sand.u32 %s91, 1
          %s458 = smul.addr %s457, 16
          %s459 = scalar_lea.vmem [#allocation7], %s458
          %s461 = ssub.s32 256, 256
          %462 = vsyncadd %s456, %s461
          %s463 = smul.addr %s29, 2
          %s464 = smul.addr %s463, 128
          %s465 = scalar_lea.hbm %s2, %s464
          %s466 = sshll.u32 %s459, 4
          %s467 = int_to_ptr.vmem [resolvable:$true] %s466
          %472 = dma.hbm_to_vmem [thread:$0]  %s465, 256, %s467, %s456, 128, 128, 8
        $region60: #{tpu_custom_call.1} parent=47 // pred_fallthru
          _
        // Predicated region
        $region61: #{tpu_custom_call.1} parent=47 // pred_check
          %p473 = pneg %p127
        $region62: #{tpu_custom_call.1} parent=47 // pred_check_branch
          %475 = sbr.rel (%p473) target = $region64
        $region63: #{tpu_custom_call.1} parent=47 // pred_region
          %p476 = scmp.lt.s32.totalorder %s29, 1
          %s477 = scalar_select %p476, %s29, 1
          %s478 = scalar_lea.vmem %s3, %s477
        $region64: #{tpu_custom_call.1} parent=47 // pred_fallthru
          _
      $region48: #{tpu_custom_call.1} parent=5 // pred_fallthru
        _
      %p479 = scmp.le.s32.totalorder 1, %s29
      %p480 = scmp.lt.s32.totalorder %s29, 3
      %p481 = pnand %p479, %p480
      %p482 = pneg %p481
      // Predicated region
      $region65: #{tpu_custom_call.1} parent=5 // pred_check
        _
      $region66: #{tpu_custom_call.1} parent=5 // pred_check_branch
        %484 = sbr.rel (%p481) target = $region68
      $region67: #{tpu_custom_call.1} parent=5 // pred_region
        %s485 = ssub.s32 %s29, 1
        %s486 = sand.u32 %s42, 1
        %s487 = scalar_lea.sflag [#allocation3], %s486
        %s488 = sand.u32 %s42, 1
        %s489 = smul.addr %s488, 16
        %s490 = scalar_lea.vmem [#allocation2], %s489
        // Predicated region
        $region69: #{tpu_custom_call.1} parent=67 // pred_check
          %p491 = pneg %p55
        $region70: #{tpu_custom_call.1} parent=67 // pred_check_branch
          %493 = sbr.rel (%p491) target = $region72
        $region71: #{tpu_custom_call.1} parent=67 // pred_region
          %494 = dma.done %s487, 256
        $region72: #{tpu_custom_call.1} parent=67 // pred_fallthru
          _
        %s495 = sand.u32 %s34, 1
        %s496 = scalar_lea.sflag [#allocation6], %s495
        %s497 = sand.u32 %s68, 1
        %s498 = smul.addr %s497, 16
        %s499 = scalar_lea.vmem [#allocation5], %s498
        // Predicated region
        $region73: #{tpu_custom_call.1} parent=67 // pred_check
          %p500 = pneg %p81
        $region74: #{tpu_custom_call.1} parent=67 // pred_check_branch
          %502 = sbr.rel (%p500) target = $region76
        $region75: #{tpu_custom_call.1} parent=67 // pred_region
          %503 = dma.done %s496, 256
        $region76: #{tpu_custom_call.1} parent=67 // pred_fallthru
          _
        %s504 = sand.u32 %s34, 1
        %s505 = scalar_lea.sflag [#allocation6], %s504
        %s506 = sand.u32 %s94, 1
        %s507 = smul.addr %s506, 16
        %s508 = scalar_lea.vmem [#allocation7], %s507
        // Predicated region
        $region77: #{tpu_custom_call.1} parent=67 // pred_check
          %p509 = pneg %p107
        $region78: #{tpu_custom_call.1} parent=67 // pred_check_branch
          %511 = sbr.rel (%p509) target = $region80
        $region79: #{tpu_custom_call.1} parent=67 // pred_region
          %512 = dma.done %s505, 256
        $region80: #{tpu_custom_call.1} parent=67 // pred_fallthru
          _
        // Predicated region
        $region81: #{tpu_custom_call.1} parent=67 // pred_check
          %p513 = pneg %p154
        $region82: #{tpu_custom_call.1} parent=67 // pred_check_branch
          %515 = sbr.rel (%p513) target = $region84
        $region83: #{tpu_custom_call.1} parent=67 // pred_region
          %516 = dma.done [#allocation9], 2048
        $region84: #{tpu_custom_call.1} parent=67 // pred_fallthru
          _
        // Predicated region
        $region85: #{tpu_custom_call.1} parent=67 // pred_check
          %p517 = pneg %p196
        $region86: #{tpu_custom_call.1} parent=67 // pred_check_branch
          %519 = sbr.rel (%p517) target = $region88
        $region87: #{tpu_custom_call.1} parent=67 // pred_region
          %520 = dma.done [#allocation9], 2048
        $region88: #{tpu_custom_call.1} parent=67 // pred_fallthru
          _
        // Predicated region
        $region89: #{tpu_custom_call.1} parent=67 // pred_check
          %p521 = pneg %p238
        $region90: #{tpu_custom_call.1} parent=67 // pred_check_branch
          %523 = sbr.rel (%p521) target = $region92
        $region91: #{tpu_custom_call.1} parent=67 // pred_region
          %524 = dma.done [#allocation12], 2048
        $region92: #{tpu_custom_call.1} parent=67 // pred_fallthru
          _
        // Predicated region
        $region93: #{tpu_custom_call.1} parent=67 // pred_check
          %p525 = pneg %p280
        $region94: #{tpu_custom_call.1} parent=67 // pred_check_branch
          %527 = sbr.rel (%p525) target = $region96
        $region95: #{tpu_custom_call.1} parent=67 // pred_region
          %528 = dma.done [#allocation12], 2048
        $region96: #{tpu_custom_call.1} parent=67 // pred_fallthru
          _
        %s529 = sand.u32 %s42, 1
        %s530 = scalar_lea.sflag [#allocation3], %s529
        %s531 = sand.u32 %s42, 1
        %s532 = smul.addr %s531, 16
        %s533 = scalar_lea.vmem [#allocation2], %s532
        %p534 = pneg %p55
        %p535 = pneg %p52
        %s536 = sand.u32 %s34, 1
        %s537 = scalar_lea.sflag [#allocation6], %s536
        %s538 = sand.u32 %s68, 1
        %s539 = smul.addr %s538, 16
        %s540 = scalar_lea.vmem [#allocation5], %s539
        %p541 = pneg %p81
        %p542 = pneg %p78
        %s543 = sand.u32 %s34, 1
        %s544 = scalar_lea.sflag [#allocation6], %s543
        %s545 = sand.u32 %s94, 1
        %s546 = smul.addr %s545, 16
        %s547 = scalar_lea.vmem [#allocation7], %s546
        %p548 = pneg %p107
        %p549 = pneg %p104
        %p550 = scmp.lt.s32.totalorder %s34, 1
        %s551 = scalar_select %p550, %s34, 1
        %s552 = scalar_lea.vmem %s3, %s551
        %p553 = pneg %p133
        %p554 = pneg %p130
        %p555 = pneg %p154
        %p556 = pneg %p151
        %p557 = pneg %p175
        %p558 = pneg %p172
        %p559 = pneg %p196
        %p560 = pneg %p193
        %p561 = pneg %p217
        %p562 = pneg %p214
        %p563 = pneg %p238
        %p564 = pneg %p235
        %p565 = pneg %p259
        %p566 = pneg %p256
        %p567 = pneg %p280
        %p568 = pneg %p277
        %p569 = pneg %p301
        %p570 = pneg %p298
        %p571 = pneg %p327
        %p572 = pneg %p324
        %s573 = sand.u32 %s314, 1
        %s574 = scalar_lea.sflag [#allocation4], %s573
        %s575 = sand.u32 %s314, 1
        %s576 = smul.addr %s575, 16
        %s577 = scalar_lea.vmem [#allocation14], %s576
        %p578 = scmp.lt.s32.totalorder %s34, 1
        %s579 = scalar_select %p578, %s34, 1
        %s580 = scalar_lea.vmem %s3, %s579
        %v581 = vld [vmem:[#allocation8] sm:$0xff]
        %v582 = vld [vmem:[#allocation8 + $0x8] sm:$0xff]
        %v583 = vld [vmem:[#allocation8 + $0x10] sm:$0xff]
        %v584 = vld [vmem:[#allocation8 + $0x18] sm:$0xff]
        %v585 = vld [vmem:[#allocation8 + $0x20] sm:$0xff]
        %v586 = vld [vmem:[#allocation8 + $0x28] sm:$0xff]
        %v587 = vld [vmem:[#allocation8 + $0x30] sm:$0xff]
        %v588 = vld [vmem:[#allocation8 + $0x38] sm:$0xff]
        %v589 = vld [vmem:[#allocation8 + $0x40] sm:$0xff]
        %v590 = vld [vmem:[#allocation8 + $0x48] sm:$0xff]
        %v591 = vld [vmem:[#allocation8 + $0x50] sm:$0xff]
        %v592 = vld [vmem:[#allocation8 + $0x58] sm:$0xff]
        %v593 = vld [vmem:[#allocation8 + $0x60] sm:$0xff]
        %v594 = vld [vmem:[#allocation8 + $0x68] sm:$0xff]
        %v595 = vld [vmem:[#allocation8 + $0x70] sm:$0xff]
        %v596 = vld [vmem:[#allocation8 + $0x78] sm:$0xff]
        %v597 = vld [vmem:[#allocation10] sm:$0xff]
        %v598 = vld [vmem:[#allocation10 + $0x8] sm:$0xff]
        %v599 = vld [vmem:[#allocation10 + $0x10] sm:$0xff]
        %v600 = vld [vmem:[#allocation10 + $0x18] sm:$0xff]
        %v601 = vld [vmem:[#allocation10 + $0x20] sm:$0xff]
        %v602 = vld [vmem:[#allocation10 + $0x28] sm:$0xff]
        %v603 = vld [vmem:[#allocation10 + $0x30] sm:$0xff]
        %v604 = vld [vmem:[#allocation10 + $0x38] sm:$0xff]
        %v605 = vld [vmem:[#allocation10 + $0x40] sm:$0xff]
        %v606 = vld [vmem:[#allocation10 + $0x48] sm:$0xff]
        %v607 = vld [vmem:[#allocation10 + $0x50] sm:$0xff]
        %v608 = vld [vmem:[#allocation10 + $0x58] sm:$0xff]
        %v609 = vld [vmem:[#allocation10 + $0x60] sm:$0xff]
        %v610 = vld [vmem:[#allocation10 + $0x68] sm:$0xff]
        %v611 = vld [vmem:[#allocation10 + $0x70] sm:$0xff]
        %v612 = vld [vmem:[#allocation10 + $0x78] sm:$0xff]
        %v613 = vld [vmem:[#allocation11] sm:$0xff]
        %v614 = vld [vmem:[#allocation11 + $0x8] sm:$0xff]
        %v615 = vld [vmem:[#allocation11 + $0x10] sm:$0xff]
        %v616 = vld [vmem:[#allocation11 + $0x18] sm:$0xff]
        %v617 = vld [vmem:[#allocation11 + $0x20] sm:$0xff]
        %v618 = vld [vmem:[#allocation11 + $0x28] sm:$0xff]
        %v619 = vld [vmem:[#allocation11 + $0x30] sm:$0xff]
        %v620 = vld [vmem:[#allocation11 + $0x38] sm:$0xff]
        %v621 = vld [vmem:[#allocation11 + $0x40] sm:$0xff]
        %v622 = vld [vmem:[#allocation11 + $0x48] sm:$0xff]
        %v623 = vld [vmem:[#allocation11 + $0x50] sm:$0xff]
        %v624 = vld [vmem:[#allocation11 + $0x58] sm:$0xff]
        %v625 = vld [vmem:[#allocation11 + $0x60] sm:$0xff]
        %v626 = vld [vmem:[#allocation11 + $0x68] sm:$0xff]
        %v627 = vld [vmem:[#allocation11 + $0x70] sm:$0xff]
        %v628 = vld [vmem:[#allocation11 + $0x78] sm:$0xff]
        %v629 = vld [vmem:[#allocation13] sm:$0xff]
        %v630 = vld [vmem:[#allocation13 + $0x8] sm:$0xff]
        %v631 = vld [vmem:[#allocation13 + $0x10] sm:$0xff]
        %v632 = vld [vmem:[#allocation13 + $0x18] sm:$0xff]
        %v633 = vld [vmem:[#allocation13 + $0x20] sm:$0xff]
        %v634 = vld [vmem:[#allocation13 + $0x28] sm:$0xff]
        %v635 = vld [vmem:[#allocation13 + $0x30] sm:$0xff]
        %v636 = vld [vmem:[#allocation13 + $0x38] sm:$0xff]
        %v637 = vld [vmem:[#allocation13 + $0x40] sm:$0xff]
        %v638 = vld [vmem:[#allocation13 + $0x48] sm:$0xff]
        %v639 = vld [vmem:[#allocation13 + $0x50] sm:$0xff]
        %v640 = vld [vmem:[#allocation13 + $0x58] sm:$0xff]
        %v641 = vld [vmem:[#allocation13 + $0x60] sm:$0xff]
        %v642 = vld [vmem:[#allocation13 + $0x68] sm:$0xff]
        %v643 = vld [vmem:[#allocation13 + $0x70] sm:$0xff]
        %v644 = vld [vmem:[#allocation13 + $0x78] sm:$0xff]
        %v645 = vld [vmem:[%s5] sm:$0x1]
        %v646 = vld [vmem:[%s7] sm:$0x1]
        %v647 = vld [vmem:[%s9] sm:$0x1]
        %v648 = vld [vmem:[%s11] sm:$0x1]
        %v649 = vld [vmem:[%s490] sm:$0xff]
        %v650 = vld [vmem:[%s490 + $0x8] sm:$0xff]
        %v651 = vld [vmem:[%s499] sm:$0xff]
        %v652 = vld [vmem:[%s499 + $0x8] sm:$0xff]
        %v653 = vld [vmem:[%s508] sm:$0xff]
        %v654 = vld [vmem:[%s508 + $0x8] sm:$0xff]
        %v655 = vld [vmem:[%s580] sm:$0x1]
        %v657 = vlaneseq
        %v658 = vshrl.u32 %v657, 7
        %v659 = vsub.s32 0, %v658
        %v660 = vrot.slane %v645, %v659
        %662 = vmatprep.subr.mxu0 0.0
        %663 = vmatpush1.msra.mxu0 %v581
        %664 = vmatprep.subr.mxu0 0.0
        %665 = vmatpush1.msra.mxu0 %v582
        %666 = vmatprep.subr.mxu0 0.0
        %667 = vmatpush1.msra.mxu0 %v583
        %668 = vmatprep.subr.mxu0 0.0
        %669 = vmatpush1.msra.mxu0 %v584
        %670 = vmatprep.subr.mxu0 0.0
        %671 = vmatpush1.msra.mxu0 %v585
        %672 = vmatprep.subr.mxu0 0.0
        %673 = vmatpush1.msra.mxu0 %v586
        %674 = vmatprep.subr.mxu0 0.0
        %675 = vmatpush1.msra.mxu0 %v587
        %676 = vmatprep.subr.mxu0 0.0
        %677 = vmatpush1.msra.mxu0 %v588
        %678 = vmatprep.subr.mxu0 0.0
        %679 = vmatpush1.msra.mxu0 %v589
        %680 = vmatprep.subr.mxu0 0.0
        %681 = vmatpush1.msra.mxu0 %v590
        %682 = vmatprep.subr.mxu0 0.0
        %683 = vmatpush1.msra.mxu0 %v591
        %684 = vmatprep.subr.mxu0 0.0
        %685 = vmatpush1.msra.mxu0 %v592
        %686 = vmatprep.subr.mxu0 0.0
        %687 = vmatpush1.msra.mxu0 %v593
        %688 = vmatprep.subr.mxu0 0.0
        %689 = vmatpush1.msra.mxu0 %v594
        %690 = vmatprep.subr.mxu0 0.0
        %691 = vmatpush1.msra.mxu0 %v595
        %692 = vmatprep.subr.mxu0 0.0
        %693 = vmatpush1.msra.mxu0 %v596
        %694 = vmatprep.subr.mxu0 0.0
        %695 = vmatpush1.msra.mxu0 0.0
        %696 = vmatprep.subr.mxu0 0.0
        %697 = vmatpush1.msra.mxu0 0.0
        %698 = vmatprep.subr.mxu0 0.0
        %699 = vmatpush1.msra.mxu0 0.0
        %700 = vmatprep.subr.mxu0 0.0
        %701 = vmatpush1.msra.mxu0 0.0
        %702 = vmatprep.subr.mxu0 0.0
        %703 = vmatpush1.msra.mxu0 0.0
        %704 = vmatprep.subr.mxu0 0.0
        %705 = vmatpush1.msra.mxu0 0.0
        %706 = vmatprep.subr.mxu0 0.0
        %707 = vmatpush1.msra.mxu0 0.0
        %708 = vmatprep.subr.mxu0 0.0
        %709 = vmatpush1.msra.mxu0 0.0
        %710 = vmatprep.subr.mxu0 0.0
        %711 = vmatpush1.msra.mxu0 0.0
        %712 = vmatprep.subr.mxu0 0.0
        %713 = vmatpush1.msra.mxu0 0.0
        %714 = vmatprep.subr.mxu0 0.0
        %715 = vmatpush1.msra.mxu0 0.0
        %716 = vmatprep.subr.mxu0 0.0
        %717 = vmatpush1.msra.mxu0 0.0
        %718 = vmatprep.subr.mxu0 0.0
        %719 = vmatpush1.msra.mxu0 0.0
        %720 = vmatprep.subr.mxu0 0.0
        %721 = vmatpush1.msra.mxu0 0.0
        %722 = vmatprep.subr.mxu0 0.0
        %723 = vmatpush1.msra.mxu0 0.0
        %724 = vmatprep.subr.mxu0 0.0
        %725 = vmatpush1.msra.mxu0 0.0
        %726 = vmatprep.mubr.f32.mxu0 0.0
        %727 = vmatmul.mubr.f32.gmra.mrb[0].mxu0 %v649
        %v728 = vpop.f32.mrb[0].mxu0
        %v729 = vadd.f32 %v660, %v728
        %v730 = vpop.f32.mrb[0].mxu0
        %731 = vmatprep.mubr.f32.mxu0 0.0
        %732 = vmatmul.mubr.f32.gmra.mrb[0].mxu0 %v650
        %v733 = vpop.f32.mrb[0].mxu0
        %v734 = vadd.f32 %v660, %v733
        %v735 = vpop.f32.mrb[0].mxu0
        %736 = vdwg.mxu0
        %v737 = vmul.f32 %v729, 0.17677669
        %v738 = vmul.f32 %v734, 0.17677669
        %v740 = vlaneseq
        %v741 = vshrl.u32 %v740, 7
        %v742 = vsub.s32 0, %v741
        %v743 = vrot.slane %v646, %v742
        %745 = vmatprep.subr.mxu0 0.0
        %746 = vmatpush1.msra.mxu0 %v597
        %747 = vmatprep.subr.mxu0 0.0
        %748 = vmatpush1.msra.mxu0 %v598
        %749 = vmatprep.subr.mxu0 0.0
        %750 = vmatpush1.msra.mxu0 %v599
        %751 = vmatprep.subr.mxu0 0.0
        %752 = vmatpush1.msra.mxu0 %v600
        %753 = vmatprep.subr.mxu0 0.0
        %754 = vmatpush1.msra.mxu0 %v601
        %755 = vmatprep.subr.mxu0 0.0
        %756 = vmatpush1.msra.mxu0 %v602
        %757 = vmatprep.subr.mxu0 0.0
        %758 = vmatpush1.msra.mxu0 %v603
        %759 = vmatprep.subr.mxu0 0.0
        %760 = vmatpush1.msra.mxu0 %v604
        %761 = vmatprep.subr.mxu0 0.0
        %762 = vmatpush1.msra.mxu0 %v605
        %763 = vmatprep.subr.mxu0 0.0
        %764 = vmatpush1.msra.mxu0 %v606
        %765 = vmatprep.subr.mxu0 0.0
        %766 = vmatpush1.msra.mxu0 %v607
        %767 = vmatprep.subr.mxu0 0.0
        %768 = vmatpush1.msra.mxu0 %v608
        %769 = vmatprep.subr.mxu0 0.0
        %770 = vmatpush1.msra.mxu0 %v609
        %771 = vmatprep.subr.mxu0 0.0
        %772 = vmatpush1.msra.mxu0 %v610
        %773 = vmatprep.subr.mxu0 0.0
        %774 = vmatpush1.msra.mxu0 %v611
        %775 = vmatprep.subr.mxu0 0.0
        %776 = vmatpush1.msra.mxu0 %v612
        %777 = vmatprep.subr.mxu0 0.0
        %778 = vmatpush1.msra.mxu0 0.0
        %779 = vmatprep.subr.mxu0 0.0
        %780 = vmatpush1.msra.mxu0 0.0
        %781 = vmatprep.subr.mxu0 0.0
        %782 = vmatpush1.msra.mxu0 0.0
        %783 = vmatprep.subr.mxu0 0.0
        %784 = vmatpush1.msra.mxu0 0.0
        %785 = vmatprep.subr.mxu0 0.0
        %786 = vmatpush1.msra.mxu0 0.0
        %787 = vmatprep.subr.mxu0 0.0
        %788 = vmatpush1.msra.mxu0 0.0
        %789 = vmatprep.subr.mxu0 0.0
        %790 = vmatpush1.msra.mxu0 0.0
        %791 = vmatprep.subr.mxu0 0.0
        %792 = vmatpush1.msra.mxu0 0.0
        %793 = vmatprep.subr.mxu0 0.0
        %794 = vmatpush1.msra.mxu0 0.0
        %795 = vmatprep.subr.mxu0 0.0
        %796 = vmatpush1.msra.mxu0 0.0
        %797 = vmatprep.subr.mxu0 0.0
        %798 = vmatpush1.msra.mxu0 0.0
        %799 = vmatprep.subr.mxu0 0.0
        %800 = vmatpush1.msra.mxu0 0.0
        %801 = vmatprep.subr.mxu0 0.0
        %802 = vmatpush1.msra.mxu0 0.0
        %803 = vmatprep.subr.mxu0 0.0
        %804 = vmatpush1.msra.mxu0 0.0
        %805 = vmatprep.subr.mxu0 0.0
        %806 = vmatpush1.msra.mxu0 0.0
        %807 = vmatprep.subr.mxu0 0.0
        %808 = vmatpush1.msra.mxu0 0.0
        %809 = vmatprep.mubr.f32.mxu0 0.0
        %810 = vmatmul.mubr.f32.gmra.mrb[0].mxu0 %v651
        %v811 = vpop.f32.mrb[0].mxu0
        %v812 = vadd.f32 %v743, %v811
        %v813 = vpop.f32.mrb[0].mxu0
        %814 = vmatprep.mubr.f32.mxu0 0.0
        %815 = vmatmul.mubr.f32.gmra.mrb[0].mxu0 %v652
        %v816 = vpop.f32.mrb[0].mxu0
        %v817 = vadd.f32 %v743, %v816
        %v818 = vpop.f32.mrb[0].mxu0
        %819 = vdwg.mxu0
        %v821 = vlaneseq
        %v822 = vshrl.u32 %v821, 7
        %v823 = vsub.s32 0, %v822
        %v824 = vrot.slane %v647, %v823
        %826 = vmatprep.subr.mxu0 0.0
        %827 = vmatpush1.msra.mxu0 %v613
        %828 = vmatprep.subr.mxu0 0.0
        %829 = vmatpush1.msra.mxu0 %v614
        %830 = vmatprep.subr.mxu0 0.0
        %831 = vmatpush1.msra.mxu0 %v615
        %832 = vmatprep.subr.mxu0 0.0
        %833 = vmatpush1.msra.mxu0 %v616
        %834 = vmatprep.subr.mxu0 0.0
        %835 = vmatpush1.msra.mxu0 %v617
        %836 = vmatprep.subr.mxu0 0.0
        %837 = vmatpush1.msra.mxu0 %v618
        %838 = vmatprep.subr.mxu0 0.0
        %839 = vmatpush1.msra.mxu0 %v619
        %840 = vmatprep.subr.mxu0 0.0
        %841 = vmatpush1.msra.mxu0 %v620
        %842 = vmatprep.subr.mxu0 0.0
        %843 = vmatpush1.msra.mxu0 %v621
        %844 = vmatprep.subr.mxu0 0.0
        %845 = vmatpush1.msra.mxu0 %v622
        %846 = vmatprep.subr.mxu0 0.0
        %847 = vmatpush1.msra.mxu0 %v623
        %848 = vmatprep.subr.mxu0 0.0
        %849 = vmatpush1.msra.mxu0 %v624
        %850 = vmatprep.subr.mxu0 0.0
        %851 = vmatpush1.msra.mxu0 %v625
        %852 = vmatprep.subr.mxu0 0.0
        %853 = vmatpush1.msra.mxu0 %v626
        %854 = vmatprep.subr.mxu0 0.0
        %855 = vmatpush1.msra.mxu0 %v627
        %856 = vmatprep.subr.mxu0 0.0
        %857 = vmatpush1.msra.mxu0 %v628
        %858 = vmatprep.subr.mxu0 0.0
        %859 = vmatpush1.msra.mxu0 0.0
        %860 = vmatprep.subr.mxu0 0.0
        %861 = vmatpush1.msra.mxu0 0.0
        %862 = vmatprep.subr.mxu0 0.0
        %863 = vmatpush1.msra.mxu0 0.0
        %864 = vmatprep.subr.mxu0 0.0
        %865 = vmatpush1.msra.mxu0 0.0
        %866 = vmatprep.subr.mxu0 0.0
        %867 = vmatpush1.msra.mxu0 0.0
        %868 = vmatprep.subr.mxu0 0.0
        %869 = vmatpush1.msra.mxu0 0.0
        %870 = vmatprep.subr.mxu0 0.0
        %871 = vmatpush1.msra.mxu0 0.0
        %872 = vmatprep.subr.mxu0 0.0
        %873 = vmatpush1.msra.mxu0 0.0
        %874 = vmatprep.subr.mxu0 0.0
        %875 = vmatpush1.msra.mxu0 0.0
        %876 = vmatprep.subr.mxu0 0.0
        %877 = vmatpush1.msra.mxu0 0.0
        %878 = vmatprep.subr.mxu0 0.0
        %879 = vmatpush1.msra.mxu0 0.0
        %880 = vmatprep.subr.mxu0 0.0
        %881 = vmatpush1.msra.mxu0 0.0
        %882 = vmatprep.subr.mxu0 0.0
        %883 = vmatpush1.msra.mxu0 0.0
        %884 = vmatprep.subr.mxu0 0.0
        %885 = vmatpush1.msra.mxu0 0.0
        %886 = vmatprep.subr.mxu0 0.0
        %887 = vmatpush1.msra.mxu0 0.0
        %888 = vmatprep.subr.mxu0 0.0
        %889 = vmatpush1.msra.mxu0 0.0
        %890 = vmatprep.mubr.f32.mxu0 0.0
        %891 = vmatmul.mubr.f32.gmra.mrb[0].mxu0 %v653
        %v892 = vpop.f32.mrb[0].mxu0
        %v893 = vadd.f32 %v824, %v892
        %v894 = vpop.f32.mrb[0].mxu0
        %895 = vmatprep.mubr.f32.mxu0 0.0
        %896 = vmatmul.mubr.f32.gmra.mrb[0].mxu0 %v654
        %v897 = vpop.f32.mrb[0].mxu0
        %v898 = vadd.f32 %v824, %v897
        %v899 = vpop.f32.mrb[0].mxu0
        %900 = vdwg.mxu0
        %v902 = vlaneseq
        %v903 = vshrl.u32 %v902, 7
        %v904 = vsub.s32 0, %v903
        %v905 = vrot.slane %v655, %v904
        %vm907 = vcmask 261120
        %v909 = vsel %vm907, %v737, 0
        %v912 = vsel %vm907, %v738, 0
        %v915 = vsel %vm907, %v812, 0
        %v918 = vsel %vm907, %v817, 0
        %920 = vmatprep.subr.mxu0 0.0
        %921 = vmatpush1.xpose.msra.mxu0 %v915
        %922 = vmatprep.subr.mxu0 0.0
        %923 = vmatpush1.xpose.msra.mxu0 %v918
        %924 = vmatprep.subr.mxu0 0.0
        %925 = vmatpush1.xpose.msra.mxu0 0.0
        %926 = vmatprep.subr.mxu0 0.0
        %927 = vmatpush1.xpose.msra.mxu0 0.0
        %928 = vmatprep.subr.mxu0 0.0
        %929 = vmatpush1.xpose.msra.mxu0 0.0
        %930 = vmatprep.subr.mxu0 0.0
        %931 = vmatpush1.xpose.msra.mxu0 0.0
        %932 = vmatprep.subr.mxu0 0.0
        %933 = vmatpush1.xpose.msra.mxu0 0.0
        %934 = vmatprep.subr.mxu0 0.0
        %935 = vmatpush1.xpose.msra.mxu0 0.0
        %936 = vmatprep.subr.mxu0 0.0
        %937 = vmatpush1.xpose.msra.mxu0 0.0
        %938 = vmatprep.subr.mxu0 0.0
        %939 = vmatpush1.xpose.msra.mxu0 0.0
        %940 = vmatprep.subr.mxu0 0.0
        %941 = vmatpush1.xpose.msra.mxu0 0.0
        %942 = vmatprep.subr.mxu0 0.0
        %943 = vmatpush1.xpose.msra.mxu0 0.0
        %944 = vmatprep.subr.mxu0 0.0
        %945 = vmatpush1.xpose.msra.mxu0 0.0
        %946 = vmatprep.subr.mxu0 0.0
        %947 = vmatpush1.xpose.msra.mxu0 0.0
        %948 = vmatprep.subr.mxu0 0.0
        %949 = vmatpush1.xpose.msra.mxu0 0.0
        %950 = vmatprep.subr.mxu0 0.0
        %951 = vmatpush1.xpose.msra.mxu0 0.0
        %952 = vmatprep.subr.mxu0 0.0
        %953 = vmatpush1.xpose.msra.mxu0 0.0
        %954 = vmatprep.subr.mxu0 0.0
        %955 = vmatpush1.xpose.msra.mxu0 0.0
        %956 = vmatprep.subr.mxu0 0.0
        %957 = vmatpush1.xpose.msra.mxu0 0.0
        %958 = vmatprep.subr.mxu0 0.0
        %959 = vmatpush1.xpose.msra.mxu0 0.0
        %960 = vmatprep.subr.mxu0 0.0
        %961 = vmatpush1.xpose.msra.mxu0 0.0
        %962 = vmatprep.subr.mxu0 0.0
        %963 = vmatpush1.xpose.msra.mxu0 0.0
        %964 = vmatprep.subr.mxu0 0.0
        %965 = vmatpush1.xpose.msra.mxu0 0.0
        %966 = vmatprep.subr.mxu0 0.0
        %967 = vmatpush1.xpose.msra.mxu0 0.0
        %968 = vmatprep.subr.mxu0 0.0
        %969 = vmatpush1.xpose.msra.mxu0 0.0
        %970 = vmatprep.subr.mxu0 0.0
        %971 = vmatpush1.xpose.msra.mxu0 0.0
        %972 = vmatprep.subr.mxu0 0.0
        %973 = vmatpush1.xpose.msra.mxu0 0.0
        %974 = vmatprep.subr.mxu0 0.0
        %975 = vmatpush1.xpose.msra.mxu0 0.0
        %976 = vmatprep.subr.mxu0 0.0
        %977 = vmatpush1.xpose.msra.mxu0 0.0
        %978 = vmatprep.subr.mxu0 0.0
        %979 = vmatpush1.xpose.msra.mxu0 0.0
        %980 = vmatprep.subr.mxu0 0.0
        %981 = vmatpush1.xpose.msra.mxu0 0.0
        %982 = vmatprep.subr.mxu0 0.0
        %983 = vmatpush1.xpose.msra.mxu0 0.0
        %984 = vmatprep.mubr.f32.mxu0 0.0
        %985 = vmatmul.mubr.f32.gmra.mrb[0].mxu0 %v909
        %v986 = vpop.f32.mrb[0].mxu0
        %v987 = vadd.f32 %v905, %v986
        %v988 = vpop.f32.mrb[0].mxu0
        %989 = vmatprep.mubr.f32.mxu0 0.0
        %990 = vmatmul.mubr.f32.gmra.mrb[0].mxu0 %v912
        %v991 = vpop.f32.mrb[0].mxu0
        %v992 = vadd.f32 %v905, %v991
        %v993 = vpop.f32.mrb[0].mxu0
        %994 = vdwg.mxu0
        %vm995 = vcmask 130048
        %v996 = vsel %vm995, %v987, -inf
        %997 = vmax.xlane.f32.xlu0 %v996
        %v998 = vpop.xlane.xlu0 %997
        %v999 = vsel %vm995, %v992, -inf
        %1000 = vmax.xlane.f32.xlu0 %v999
        %v1001 = vpop.xlane.xlu0 %1000
        %v1002 = vsub.f32 %v987, %v998
        %v1003 = vsub.f32 %v992, %v1001
        %v1004 = vmul.f32 %v1002, 1.442695
        %v1005 = vpow.pop %v1004
        %v1006 = vmul.f32 %v1003, 1.442695
        %v1007 = vpow.pop %v1006
        %v1008 = vsel %vm995, %v1005, 0.0
        %1009 = vadd.xlane.f32.xlu0 %v1008
        %v1010 = vpop.xlane.xlu0 %1009
        %v1011 = vsel %vm995, %v1007, 0.0
        %1012 = vadd.xlane.f32.xlu0 %v1011
        %v1013 = vpop.xlane.xlu0 %1012
        %v1014 = vrcp.pop %v1010
        %v1015 = vrcp.pop %v1013
        %v1016 = vmul.f32 %v1005, %v1014
        %v1017 = vmul.f32 %v1007, %v1015
        %v1019 = vsel %vm995, %v1016, 0
        %v1022 = vsel %vm995, %v1017, 0
        %1024 = vmatprep.subr.mxu0 0.0
        %1025 = vmatpush1.msra.mxu0 %v893
        %1026 = vmatprep.subr.mxu0 0.0
        %1027 = vmatpush1.msra.mxu0 %v898
        %1028 = vmatprep.subr.mxu0 0.0
        %1029 = vmatpush1.msra.mxu0 0.0
        %1030 = vmatprep.subr.mxu0 0.0
        %1031 = vmatpush1.msra.mxu0 0.0
        %1032 = vmatprep.subr.mxu0 0.0
        %1033 = vmatpush1.msra.mxu0 0.0
        %1034 = vmatprep.subr.mxu0 0.0
        %1035 = vmatpush1.msra.mxu0 0.0
        %1036 = vmatprep.subr.mxu0 0.0
        %1037 = vmatpush1.msra.mxu0 0.0
        %1038 = vmatprep.subr.mxu0 0.0
        %1039 = vmatpush1.msra.mxu0 0.0
        %1040 = vmatprep.subr.mxu0 0.0
        %1041 = vmatpush1.msra.mxu0 0.0
        %1042 = vmatprep.subr.mxu0 0.0
        %1043 = vmatpush1.msra.mxu0 0.0
        %1044 = vmatprep.subr.mxu0 0.0
        %1045 = vmatpush1.msra.mxu0 0.0
        %1046 = vmatprep.subr.mxu0 0.0
        %1047 = vmatpush1.msra.mxu0 0.0
        %1048 = vmatprep.subr.mxu0 0.0
        %1049 = vmatpush1.msra.mxu0 0.0
        %1050 = vmatprep.subr.mxu0 0.0
        %1051 = vmatpush1.msra.mxu0 0.0
        %1052 = vmatprep.subr.mxu0 0.0
        %1053 = vmatpush1.msra.mxu0 0.0
        %1054 = vmatprep.subr.mxu0 0.0
        %1055 = vmatpush1.msra.mxu0 0.0
        %1056 = vmatprep.subr.mxu0 0.0
        %1057 = vmatpush1.msra.mxu0 0.0
        %1058 = vmatprep.subr.mxu0 0.0
        %1059 = vmatpush1.msra.mxu0 0.0
        %1060 = vmatprep.subr.mxu0 0.0
        %1061 = vmatpush1.msra.mxu0 0.0
        %1062 = vmatprep.subr.mxu0 0.0
        %1063 = vmatpush1.msra.mxu0 0.0
        %1064 = vmatprep.subr.mxu0 0.0
        %1065 = vmatpush1.msra.mxu0 0.0
        %1066 = vmatprep.subr.mxu0 0.0
        %1067 = vmatpush1.msra.mxu0 0.0
        %1068 = vmatprep.subr.mxu0 0.0
        %1069 = vmatpush1.msra.mxu0 0.0
        %1070 = vmatprep.subr.mxu0 0.0
        %1071 = vmatpush1.msra.mxu0 0.0
        %1072 = vmatprep.subr.mxu0 0.0
        %1073 = vmatpush1.msra.mxu0 0.0
        %1074 = vmatprep.subr.mxu0 0.0
        %1075 = vmatpush1.msra.mxu0 0.0
        %1076 = vmatprep.subr.mxu0 0.0
        %1077 = vmatpush1.msra.mxu0 0.0
        %1078 = vmatprep.subr.mxu0 0.0
        %1079 = vmatpush1.msra.mxu0 0.0
        %1080 = vmatprep.subr.mxu0 0.0
        %1081 = vmatpush1.msra.mxu0 0.0
        %1082 = vmatprep.subr.mxu0 0.0
        %1083 = vmatpush1.msra.mxu0 0.0
        %1084 = vmatprep.subr.mxu0 0.0
        %1085 = vmatpush1.msra.mxu0 0.0
        %1086 = vmatprep.subr.mxu0 0.0
        %1087 = vmatpush1.msra.mxu0 0.0
        %1088 = vmatprep.mubr.f32.mxu0 0.0
        %1089 = vmatmul.mubr.f32.gmra.mrb[0].mxu0 %v1019
        %v1090 = vpop.f32.mrb[0].mxu0
        %v1091 = vadd.f32 0.0, %v1090
        %v1092 = vpop.f32.mrb[0].mxu0
        %1093 = vmatprep.mubr.f32.mxu0 0.0
        %1094 = vmatmul.mubr.f32.gmra.mrb[0].mxu0 %v1022
        %v1095 = vpop.f32.mrb[0].mxu0
        %v1096 = vadd.f32 0.0, %v1095
        %v1097 = vpop.f32.mrb[0].mxu0
        %1098 = vdwg.mxu0
        %1099 = vrot.lane.b32.xlu0 %v737, 96
        %v1100 = vpop.permute.xlu0 %1099
        %1101 = vrot.lane.b32.xlu0 %v738, 96
        %v1102 = vpop.permute.xlu0 %1101
        %1103 = vrot.lane.b32.xlu0 %v812, 96
        %v1104 = vpop.permute.xlu0 %1103
        %1105 = vrot.lane.b32.xlu0 %v817, 96
        %v1106 = vpop.permute.xlu0 %1105
        %v1107 = vsel %vm907, %v1100, 0
        %v1109 = vsel %vm907, %v1102, 0
        %v1111 = vsel %vm907, %v1104, 0
        %v1113 = vsel %vm907, %v1106, 0
        %1115 = vmatprep.subr.mxu0 0.0
        %1116 = vmatpush1.xpose.msra.mxu0 %v1111
        %1117 = vmatprep.subr.mxu0 0.0
        %1118 = vmatpush1.xpose.msra.mxu0 %v1113
        %1119 = vmatprep.subr.mxu0 0.0
        %1120 = vmatpush1.xpose.msra.mxu0 0.0
        %1121 = vmatprep.subr.mxu0 0.0
        %1122 = vmatpush1.xpose.msra.mxu0 0.0
        %1123 = vmatprep.subr.mxu0 0.0
        %1124 = vmatpush1.xpose.msra.mxu0 0.0
        %1125 = vmatprep.subr.mxu0 0.0
        %1126 = vmatpush1.xpose.msra.mxu0 0.0
        %1127 = vmatprep.subr.mxu0 0.0
        %1128 = vmatpush1.xpose.msra.mxu0 0.0
        %1129 = vmatprep.subr.mxu0 0.0
        %1130 = vmatpush1.xpose.msra.mxu0 0.0
        %1131 = vmatprep.subr.mxu0 0.0
        %1132 = vmatpush1.xpose.msra.mxu0 0.0
        %1133 = vmatprep.subr.mxu0 0.0
        %1134 = vmatpush1.xpose.msra.mxu0 0.0
        %1135 = vmatprep.subr.mxu0 0.0
        %1136 = vmatpush1.xpose.msra.mxu0 0.0
        %1137 = vmatprep.subr.mxu0 0.0
        %1138 = vmatpush1.xpose.msra.mxu0 0.0
        %1139 = vmatprep.subr.mxu0 0.0
        %1140 = vmatpush1.xpose.msra.mxu0 0.0
        %1141 = vmatprep.subr.mxu0 0.0
        %1142 = vmatpush1.xpose.msra.mxu0 0.0
        %1143 = vmatprep.subr.mxu0 0.0
        %1144 = vmatpush1.xpose.msra.mxu0 0.0
        %1145 = vmatprep.subr.mxu0 0.0
        %1146 = vmatpush1.xpose.msra.mxu0 0.0
        %1147 = vmatprep.subr.mxu0 0.0
        %1148 = vmatpush1.xpose.msra.mxu0 0.0
        %1149 = vmatprep.subr.mxu0 0.0
        %1150 = vmatpush1.xpose.msra.mxu0 0.0
        %1151 = vmatprep.subr.mxu0 0.0
        %1152 = vmatpush1.xpose.msra.mxu0 0.0
        %1153 = vmatprep.subr.mxu0 0.0
        %1154 = vmatpush1.xpose.msra.mxu0 0.0
        %1155 = vmatprep.subr.mxu0 0.0
        %1156 = vmatpush1.xpose.msra.mxu0 0.0
        %1157 = vmatprep.subr.mxu0 0.0
        %1158 = vmatpush1.xpose.msra.mxu0 0.0
        %1159 = vmatprep.subr.mxu0 0.0
        %1160 = vmatpush1.xpose.msra.mxu0 0.0
        %1161 = vmatprep.subr.mxu0 0.0
        %1162 = vmatpush1.xpose.msra.mxu0 0.0
        %1163 = vmatprep.subr.mxu0 0.0
        %1164 = vmatpush1.xpose.msra.mxu0 0.0
        %1165 = vmatprep.subr.mxu0 0.0
        %1166 = vmatpush1.xpose.msra.mxu0 0.0
        %1167 = vmatprep.subr.mxu0 0.0
        %1168 = vmatpush1.xpose.msra.mxu0 0.0
        %1169 = vmatprep.subr.mxu0 0.0
        %1170 = vmatpush1.xpose.msra.mxu0 0.0
        %1171 = vmatprep.subr.mxu0 0.0
        %1172 = vmatpush1.xpose.msra.mxu0 0.0
        %1173 = vmatprep.subr.mxu0 0.0
        %1174 = vmatpush1.xpose.msra.mxu0 0.0
        %1175 = vmatprep.subr.mxu0 0.0
        %1176 = vmatpush1.xpose.msra.mxu0 0.0
        %1177 = vmatprep.subr.mxu0 0.0
        %1178 = vmatpush1.xpose.msra.mxu0 0.0
        %1179 = vmatprep.mubr.f32.mxu0 0.0
        %1180 = vmatmul.mubr.f32.gmra.mrb[0].mxu0 %v1107
        %v1181 = vpop.f32.mrb[0].mxu0
        %v1182 = vadd.f32 %v905, %v1181
        %v1183 = vpop.f32.mrb[0].mxu0
        %1184 = vmatprep.mubr.f32.mxu0 0.0
        %1185 = vmatmul.mubr.f32.gmra.mrb[0].mxu0 %v1109
        %v1186 = vpop.f32.mrb[0].mxu0
        %v1187 = vadd.f32 %v905, %v1186
        %v1188 = vpop.f32.mrb[0].mxu0
        %1189 = vdwg.mxu0
        %v1190 = vsel %vm995, %v1182, -inf
        %1191 = vmax.xlane.f32.xlu0 %v1190
        %v1192 = vpop.xlane.xlu0 %1191
        %v1193 = vsel %vm995, %v1187, -inf
        %1194 = vmax.xlane.f32.xlu0 %v1193
        %v1195 = vpop.xlane.xlu0 %1194
        %v1196 = vsub.f32 %v1182, %v1192
        %v1197 = vsub.f32 %v1187, %v1195
        %v1198 = vmul.f32 %v1196, 1.442695
        %v1199 = vpow.pop %v1198
        %v1200 = vmul.f32 %v1197, 1.442695
        %v1201 = vpow.pop %v1200
        %v1202 = vsel %vm995, %v1199, 0.0
        %1203 = vadd.xlane.f32.xlu0 %v1202
        %v1204 = vpop.xlane.xlu0 %1203
        %v1205 = vsel %vm995, %v1201, 0.0
        %1206 = vadd.xlane.f32.xlu0 %v1205
        %v1207 = vpop.xlane.xlu0 %1206
        %v1208 = vrcp.pop %v1204
        %v1209 = vrcp.pop %v1207
        %v1210 = vmul.f32 %v1199, %v1208
        %v1211 = vmul.f32 %v1201, %v1209
        %1214 = vrot.lane.b32.xlu0 %v893, 96
        %v1215 = vpop.permute.xlu0 %1214
        %1216 = vrot.lane.b32.xlu0 %v898, 96
        %v1217 = vpop.permute.xlu0 %1216
        %v1221 = vsel %vm995, %v1210, 0
        %v1224 = vsel %vm995, %v1211, 0
        %1226 = vmatprep.subr.mxu0 0.0
        %1227 = vmatpush1.msra.mxu0 %v1215
        %1228 = vmatprep.subr.mxu0 0.0
        %1229 = vmatpush1.msra.mxu0 %v1217
        %1230 = vmatprep.subr.mxu0 0.0
        %1231 = vmatpush1.msra.mxu0 0.0
        %1232 = vmatprep.subr.mxu0 0.0
        %1233 = vmatpush1.msra.mxu0 0.0
        %1234 = vmatprep.subr.mxu0 0.0
        %1235 = vmatpush1.msra.mxu0 0.0
        %1236 = vmatprep.subr.mxu0 0.0
        %1237 = vmatpush1.msra.mxu0 0.0
        %1238 = vmatprep.subr.mxu0 0.0
        %1239 = vmatpush1.msra.mxu0 0.0
        %1240 = vmatprep.subr.mxu0 0.0
        %1241 = vmatpush1.msra.mxu0 0.0
        %1242 = vmatprep.subr.mxu0 0.0
        %1243 = vmatpush1.msra.mxu0 0.0
        %1244 = vmatprep.subr.mxu0 0.0
        %1245 = vmatpush1.msra.mxu0 0.0
        %1246 = vmatprep.subr.mxu0 0.0
        %1247 = vmatpush1.msra.mxu0 0.0
        %1248 = vmatprep.subr.mxu0 0.0
        %1249 = vmatpush1.msra.mxu0 0.0
        %1250 = vmatprep.subr.mxu0 0.0
        %1251 = vmatpush1.msra.mxu0 0.0
        %1252 = vmatprep.subr.mxu0 0.0
        %1253 = vmatpush1.msra.mxu0 0.0
        %1254 = vmatprep.subr.mxu0 0.0
        %1255 = vmatpush1.msra.mxu0 0.0
        %1256 = vmatprep.subr.mxu0 0.0
        %1257 = vmatpush1.msra.mxu0 0.0
        %1258 = vmatprep.subr.mxu0 0.0
        %1259 = vmatpush1.msra.mxu0 0.0
        %1260 = vmatprep.subr.mxu0 0.0
        %1261 = vmatpush1.msra.mxu0 0.0
        %1262 = vmatprep.subr.mxu0 0.0
        %1263 = vmatpush1.msra.mxu0 0.0
        %1264 = vmatprep.subr.mxu0 0.0
        %1265 = vmatpush1.msra.mxu0 0.0
        %1266 = vmatprep.subr.mxu0 0.0
        %1267 = vmatpush1.msra.mxu0 0.0
        %1268 = vmatprep.subr.mxu0 0.0
        %1269 = vmatpush1.msra.mxu0 0.0
        %1270 = vmatprep.subr.mxu0 0.0
        %1271 = vmatpush1.msra.mxu0 0.0
        %1272 = vmatprep.subr.mxu0 0.0
        %1273 = vmatpush1.msra.mxu0 0.0
        %1274 = vmatprep.subr.mxu0 0.0
        %1275 = vmatpush1.msra.mxu0 0.0
        %1276 = vmatprep.subr.mxu0 0.0
        %1277 = vmatpush1.msra.mxu0 0.0
        %1278 = vmatprep.subr.mxu0 0.0
        %1279 = vmatpush1.msra.mxu0 0.0
        %1280 = vmatprep.subr.mxu0 0.0
        %1281 = vmatpush1.msra.mxu0 0.0
        %1282 = vmatprep.subr.mxu0 0.0
        %1283 = vmatpush1.msra.mxu0 0.0
        %1284 = vmatprep.subr.mxu0 0.0
        %1285 = vmatpush1.msra.mxu0 0.0
        %1286 = vmatprep.subr.mxu0 0.0
        %1287 = vmatpush1.msra.mxu0 0.0
        %1288 = vmatprep.subr.mxu0 0.0
        %1289 = vmatpush1.msra.mxu0 0.0
        %1290 = vmatprep.mubr.f32.mxu0 0.0
        %1291 = vmatmul.mubr.f32.gmra.mrb[0].mxu0 %v1221
        %v1292 = vpop.f32.mrb[0].mxu0
        %v1293 = vadd.f32 0.0, %v1292
        %v1294 = vpop.f32.mrb[0].mxu0
        %1295 = vmatprep.mubr.f32.mxu0 0.0
        %1296 = vmatmul.mubr.f32.gmra.mrb[0].mxu0 %v1224
        %v1297 = vpop.f32.mrb[0].mxu0
        %v1298 = vadd.f32 0.0, %v1297
        %v1299 = vpop.f32.mrb[0].mxu0
        %1300 = vdwg.mxu0
        %1301 = vrot.lane.b32.xlu0 %v737, 64
        %v1302 = vpop.permute.xlu0 %1301
        %1303 = vrot.lane.b32.xlu0 %v738, 64
        %v1304 = vpop.permute.xlu0 %1303
        %1305 = vrot.lane.b32.xlu0 %v812, 64
        %v1306 = vpop.permute.xlu0 %1305
        %1307 = vrot.lane.b32.xlu0 %v817, 64
        %v1308 = vpop.permute.xlu0 %1307
        %v1309 = vsel %vm907, %v1302, 0
        %v1311 = vsel %vm907, %v1304, 0
        %v1313 = vsel %vm907, %v1306, 0
        %v1315 = vsel %vm907, %v1308, 0
        %1317 = vmatprep.subr.mxu0 0.0
        %1318 = vmatpush1.xpose.msra.mxu0 %v1313
        %1319 = vmatprep.subr.mxu0 0.0
        %1320 = vmatpush1.xpose.msra.mxu0 %v1315
        %1321 = vmatprep.subr.mxu0 0.0
        %1322 = vmatpush1.xpose.msra.mxu0 0.0
        %1323 = vmatprep.subr.mxu0 0.0
        %1324 = vmatpush1.xpose.msra.mxu0 0.0
        %1325 = vmatprep.subr.mxu0 0.0
        %1326 = vmatpush1.xpose.msra.mxu0 0.0
        %1327 = vmatprep.subr.mxu0 0.0
        %1328 = vmatpush1.xpose.msra.mxu0 0.0
        %1329 = vmatprep.subr.mxu0 0.0
        %1330 = vmatpush1.xpose.msra.mxu0 0.0
        %1331 = vmatprep.subr.mxu0 0.0
        %1332 = vmatpush1.xpose.msra.mxu0 0.0
        %1333 = vmatprep.subr.mxu0 0.0
        %1334 = vmatpush1.xpose.msra.mxu0 0.0
        %1335 = vmatprep.subr.mxu0 0.0
        %1336 = vmatpush1.xpose.msra.mxu0 0.0
        %1337 = vmatprep.subr.mxu0 0.0
        %1338 = vmatpush1.xpose.msra.mxu0 0.0
        %1339 = vmatprep.subr.mxu0 0.0
        %1340 = vmatpush1.xpose.msra.mxu0 0.0
        %1341 = vmatprep.subr.mxu0 0.0
        %1342 = vmatpush1.xpose.msra.mxu0 0.0
        %1343 = vmatprep.subr.mxu0 0.0
        %1344 = vmatpush1.xpose.msra.mxu0 0.0
        %1345 = vmatprep.subr.mxu0 0.0
        %1346 = vmatpush1.xpose.msra.mxu0 0.0
        %1347 = vmatprep.subr.mxu0 0.0
        %1348 = vmatpush1.xpose.msra.mxu0 0.0
        %1349 = vmatprep.subr.mxu0 0.0
        %1350 = vmatpush1.xpose.msra.mxu0 0.0
        %1351 = vmatprep.subr.mxu0 0.0
        %1352 = vmatpush1.xpose.msra.mxu0 0.0
        %1353 = vmatprep.subr.mxu0 0.0
        %1354 = vmatpush1.xpose.msra.mxu0 0.0
        %1355 = vmatprep.subr.mxu0 0.0
        %1356 = vmatpush1.xpose.msra.mxu0 0.0
        %1357 = vmatprep.subr.mxu0 0.0
        %1358 = vmatpush1.xpose.msra.mxu0 0.0
        %1359 = vmatprep.subr.mxu0 0.0
        %1360 = vmatpush1.xpose.msra.mxu0 0.0
        %1361 = vmatprep.subr.mxu0 0.0
        %1362 = vmatpush1.xpose.msra.mxu0 0.0
        %1363 = vmatprep.subr.mxu0 0.0
        %1364 = vmatpush1.xpose.msra.mxu0 0.0
        %1365 = vmatprep.subr.mxu0 0.0
        %1366 = vmatpush1.xpose.msra.mxu0 0.0
        %1367 = vmatprep.subr.mxu0 0.0
        %1368 = vmatpush1.xpose.msra.mxu0 0.0
        %1369 = vmatprep.subr.mxu0 0.0
        %1370 = vmatpush1.xpose.msra.mxu0 0.0
        %1371 = vmatprep.subr.mxu0 0.0
        %1372 = vmatpush1.xpose.msra.mxu0 0.0
        %1373 = vmatprep.subr.mxu0 0.0
        %1374 = vmatpush1.xpose.msra.mxu0 0.0
        %1375 = vmatprep.subr.mxu0 0.0
        %1376 = vmatpush1.xpose.msra.mxu0 0.0
        %1377 = vmatprep.subr.mxu0 0.0
        %1378 = vmatpush1.xpose.msra.mxu0 0.0
        %1379 = vmatprep.subr.mxu0 0.0
        %1380 = vmatpush1.xpose.msra.mxu0 0.0
        %1381 = vmatprep.mubr.f32.mxu0 0.0
        %1382 = vmatmul.mubr.f32.gmra.mrb[0].mxu0 %v1309
        %v1383 = vpop.f32.mrb[0].mxu0
        %v1384 = vadd.f32 %v905, %v1383
        %v1385 = vpop.f32.mrb[0].mxu0
        %1386 = vmatprep.mubr.f32.mxu0 0.0
        %1387 = vmatmul.mubr.f32.gmra.mrb[0].mxu0 %v1311
        %v1388 = vpop.f32.mrb[0].mxu0
        %v1389 = vadd.f32 %v905, %v1388
        %v1390 = vpop.f32.mrb[0].mxu0
        %1391 = vdwg.mxu0
        %v1392 = vsel %vm995, %v1384, -inf
        %1393 = vmax.xlane.f32.xlu0 %v1392
        %v1394 = vpop.xlane.xlu0 %1393
        %v1395 = vsel %vm995, %v1389, -inf
        %1396 = vmax.xlane.f32.xlu0 %v1395
        %v1397 = vpop.xlane.xlu0 %1396
        %v1398 = vsub.f32 %v1384, %v1394
        %v1399 = vsub.f32 %v1389, %v1397
        %v1400 = vmul.f32 %v1398, 1.442695
        %v1401 = vpow.pop %v1400
        %v1402 = vmul.f32 %v1399, 1.442695
        %v1403 = vpow.pop %v1402
        %v1404 = vsel %vm995, %v1401, 0.0
        %1405 = vadd.xlane.f32.xlu0 %v1404
        %v1406 = vpop.xlane.xlu0 %1405
        %v1407 = vsel %vm995, %v1403, 0.0
        %1408 = vadd.xlane.f32.xlu0 %v1407
        %v1409 = vpop.xlane.xlu0 %1408
        %v1410 = vrcp.pop %v1406
        %v1411 = vrcp.pop %v1409
        %v1412 = vmul.f32 %v1401, %v1410
        %v1413 = vmul.f32 %v1403, %v1411
        %1414 = vrot.lane.b32.xlu0 %v893, 64
        %v1415 = vpop.permute.xlu0 %1414
        %1416 = vrot.lane.b32.xlu0 %v898, 64
        %v1417 = vpop.permute.xlu0 %1416
        %v1421 = vsel %vm995, %v1412, 0
        %v1424 = vsel %vm995, %v1413, 0
        %1426 = vmatprep.subr.mxu0 0.0
        %1427 = vmatpush1.msra.mxu0 %v1415
        %1428 = vmatprep.subr.mxu0 0.0
        %1429 = vmatpush1.msra.mxu0 %v1417
        %1430 = vmatprep.subr.mxu0 0.0
        %1431 = vmatpush1.msra.mxu0 0.0
        %1432 = vmatprep.subr.mxu0 0.0
        %1433 = vmatpush1.msra.mxu0 0.0
        %1434 = vmatprep.subr.mxu0 0.0
        %1435 = vmatpush1.msra.mxu0 0.0
        %1436 = vmatprep.subr.mxu0 0.0
        %1437 = vmatpush1.msra.mxu0 0.0
        %1438 = vmatprep.subr.mxu0 0.0
        %1439 = vmatpush1.msra.mxu0 0.0
        %1440 = vmatprep.subr.mxu0 0.0
        %1441 = vmatpush1.msra.mxu0 0.0
        %1442 = vmatprep.subr.mxu0 0.0
        %1443 = vmatpush1.msra.mxu0 0.0
        %1444 = vmatprep.subr.mxu0 0.0
        %1445 = vmatpush1.msra.mxu0 0.0
        %1446 = vmatprep.subr.mxu0 0.0
        %1447 = vmatpush1.msra.mxu0 0.0
        %1448 = vmatprep.subr.mxu0 0.0
        %1449 = vmatpush1.msra.mxu0 0.0
        %1450 = vmatprep.subr.mxu0 0.0
        %1451 = vmatpush1.msra.mxu0 0.0
        %1452 = vmatprep.subr.mxu0 0.0
        %1453 = vmatpush1.msra.mxu0 0.0
        %1454 = vmatprep.subr.mxu0 0.0
        %1455 = vmatpush1.msra.mxu0 0.0
        %1456 = vmatprep.subr.mxu0 0.0
        %1457 = vmatpush1.msra.mxu0 0.0
        %1458 = vmatprep.subr.mxu0 0.0
        %1459 = vmatpush1.msra.mxu0 0.0
        %1460 = vmatprep.subr.mxu0 0.0
        %1461 = vmatpush1.msra.mxu0 0.0
        %1462 = vmatprep.subr.mxu0 0.0
        %1463 = vmatpush1.msra.mxu0 0.0
        %1464 = vmatprep.subr.mxu0 0.0
        %1465 = vmatpush1.msra.mxu0 0.0
        %1466 = vmatprep.subr.mxu0 0.0
        %1467 = vmatpush1.msra.mxu0 0.0
        %1468 = vmatprep.subr.mxu0 0.0
        %1469 = vmatpush1.msra.mxu0 0.0
        %1470 = vmatprep.subr.mxu0 0.0
        %1471 = vmatpush1.msra.mxu0 0.0
        %1472 = vmatprep.subr.mxu0 0.0
        %1473 = vmatpush1.msra.mxu0 0.0
        %1474 = vmatprep.subr.mxu0 0.0
        %1475 = vmatpush1.msra.mxu0 0.0
        %1476 = vmatprep.subr.mxu0 0.0
        %1477 = vmatpush1.msra.mxu0 0.0
        %1478 = vmatprep.subr.mxu0 0.0
        %1479 = vmatpush1.msra.mxu0 0.0
        %1480 = vmatprep.subr.mxu0 0.0
        %1481 = vmatpush1.msra.mxu0 0.0
        %1482 = vmatprep.subr.mxu0 0.0
        %1483 = vmatpush1.msra.mxu0 0.0
        %1484 = vmatprep.subr.mxu0 0.0
        %1485 = vmatpush1.msra.mxu0 0.0
        %1486 = vmatprep.subr.mxu0 0.0
        %1487 = vmatpush1.msra.mxu0 0.0
        %1488 = vmatprep.subr.mxu0 0.0
        %1489 = vmatpush1.msra.mxu0 0.0
        %1490 = vmatprep.mubr.f32.mxu0 0.0
        %1491 = vmatmul.mubr.f32.gmra.mrb[0].mxu0 %v1421
        %v1492 = vpop.f32.mrb[0].mxu0
        %v1493 = vadd.f32 0.0, %v1492
        %v1494 = vpop.f32.mrb[0].mxu0
        %1495 = vmatprep.mubr.f32.mxu0 0.0
        %1496 = vmatmul.mubr.f32.gmra.mrb[0].mxu0 %v1424
        %v1497 = vpop.f32.mrb[0].mxu0
        %v1498 = vadd.f32 0.0, %v1497
        %v1499 = vpop.f32.mrb[0].mxu0
        %1500 = vdwg.mxu0
        %1501 = vrot.lane.b32.xlu0 %v737, 32
        %v1502 = vpop.permute.xlu0 %1501
        %1503 = vrot.lane.b32.xlu0 %v738, 32
        %v1504 = vpop.permute.xlu0 %1503
        %1505 = vrot.lane.b32.xlu0 %v812, 32
        %v1506 = vpop.permute.xlu0 %1505
        %1507 = vrot.lane.b32.xlu0 %v817, 32
        %v1508 = vpop.permute.xlu0 %1507
        %v1509 = vsel %vm907, %v1502, 0
        %v1511 = vsel %vm907, %v1504, 0
        %v1513 = vsel %vm907, %v1506, 0
        %v1515 = vsel %vm907, %v1508, 0
        %1517 = vmatprep.subr.mxu0 0.0
        %1518 = vmatpush1.xpose.msra.mxu0 %v1513
        %1519 = vmatprep.subr.mxu0 0.0
        %1520 = vmatpush1.xpose.msra.mxu0 %v1515
        %1521 = vmatprep.subr.mxu0 0.0
        %1522 = vmatpush1.xpose.msra.mxu0 0.0
        %1523 = vmatprep.subr.mxu0 0.0
        %1524 = vmatpush1.xpose.msra.mxu0 0.0
        %1525 = vmatprep.subr.mxu0 0.0
        %1526 = vmatpush1.xpose.msra.mxu0 0.0
        %1527 = vmatprep.subr.mxu0 0.0
        %1528 = vmatpush1.xpose.msra.mxu0 0.0
        %1529 = vmatprep.subr.mxu0 0.0
        %1530 = vmatpush1.xpose.msra.mxu0 0.0
        %1531 = vmatprep.subr.mxu0 0.0
        %1532 = vmatpush1.xpose.msra.mxu0 0.0
        %1533 = vmatprep.subr.mxu0 0.0
        %1534 = vmatpush1.xpose.msra.mxu0 0.0
        %1535 = vmatprep.subr.mxu0 0.0
        %1536 = vmatpush1.xpose.msra.mxu0 0.0
        %1537 = vmatprep.subr.mxu0 0.0
        %1538 = vmatpush1.xpose.msra.mxu0 0.0
        %1539 = vmatprep.subr.mxu0 0.0
        %1540 = vmatpush1.xpose.msra.mxu0 0.0
        %1541 = vmatprep.subr.mxu0 0.0
        %1542 = vmatpush1.xpose.msra.mxu0 0.0
        %1543 = vmatprep.subr.mxu0 0.0
        %1544 = vmatpush1.xpose.msra.mxu0 0.0
        %1545 = vmatprep.subr.mxu0 0.0
        %1546 = vmatpush1.xpose.msra.mxu0 0.0
        %1547 = vmatprep.subr.mxu0 0.0
        %1548 = vmatpush1.xpose.msra.mxu0 0.0
        %1549 = vmatprep.subr.mxu0 0.0
        %1550 = vmatpush1.xpose.msra.mxu0 0.0
        %1551 = vmatprep.subr.mxu0 0.0
        %1552 = vmatpush1.xpose.msra.mxu0 0.0
        %1553 = vmatprep.subr.mxu0 0.0
        %1554 = vmatpush1.xpose.msra.mxu0 0.0
        %1555 = vmatprep.subr.mxu0 0.0
        %1556 = vmatpush1.xpose.msra.mxu0 0.0
        %1557 = vmatprep.subr.mxu0 0.0
        %1558 = vmatpush1.xpose.msra.mxu0 0.0
        %1559 = vmatprep.subr.mxu0 0.0
        %1560 = vmatpush1.xpose.msra.mxu0 0.0
        %1561 = vmatprep.subr.mxu0 0.0
        %1562 = vmatpush1.xpose.msra.mxu0 0.0
        %1563 = vmatprep.subr.mxu0 0.0
        %1564 = vmatpush1.xpose.msra.mxu0 0.0
        %1565 = vmatprep.subr.mxu0 0.0
        %1566 = vmatpush1.xpose.msra.mxu0 0.0
        %1567 = vmatprep.subr.mxu0 0.0
        %1568 = vmatpush1.xpose.msra.mxu0 0.0
        %1569 = vmatprep.subr.mxu0 0.0
        %1570 = vmatpush1.xpose.msra.mxu0 0.0
        %1571 = vmatprep.subr.mxu0 0.0
        %1572 = vmatpush1.xpose.msra.mxu0 0.0
        %1573 = vmatprep.subr.mxu0 0.0
        %1574 = vmatpush1.xpose.msra.mxu0 0.0
        %1575 = vmatprep.subr.mxu0 0.0
        %1576 = vmatpush1.xpose.msra.mxu0 0.0
        %1577 = vmatprep.subr.mxu0 0.0
        %1578 = vmatpush1.xpose.msra.mxu0 0.0
        %1579 = vmatprep.subr.mxu0 0.0
        %1580 = vmatpush1.xpose.msra.mxu0 0.0
        %1581 = vmatprep.mubr.f32.mxu0 0.0
        %1582 = vmatmul.mubr.f32.gmra.mrb[0].mxu0 %v1509
        %v1583 = vpop.f32.mrb[0].mxu0
        %v1584 = vadd.f32 %v905, %v1583
        %v1585 = vpop.f32.mrb[0].mxu0
        %1586 = vmatprep.mubr.f32.mxu0 0.0
        %1587 = vmatmul.mubr.f32.gmra.mrb[0].mxu0 %v1511
        %v1588 = vpop.f32.mrb[0].mxu0
        %v1589 = vadd.f32 %v905, %v1588
        %v1590 = vpop.f32.mrb[0].mxu0
        %1591 = vdwg.mxu0
        %v1592 = vsel %vm995, %v1584, -inf
        %1593 = vmax.xlane.f32.xlu0 %v1592
        %v1594 = vpop.xlane.xlu0 %1593
        %v1595 = vsel %vm995, %v1589, -inf
        %1596 = vmax.xlane.f32.xlu0 %v1595
        %v1597 = vpop.xlane.xlu0 %1596
        %v1598 = vsub.f32 %v1584, %v1594
        %v1599 = vsub.f32 %v1589, %v1597
        %v1600 = vmul.f32 %v1598, 1.442695
        %v1601 = vpow.pop %v1600
        %v1602 = vmul.f32 %v1599, 1.442695
        %v1603 = vpow.pop %v1602
        %v1604 = vsel %vm995, %v1601, 0.0
        %1605 = vadd.xlane.f32.xlu0 %v1604
        %v1606 = vpop.xlane.xlu0 %1605
        %v1607 = vsel %vm995, %v1603, 0.0
        %1608 = vadd.xlane.f32.xlu0 %v1607
        %v1609 = vpop.xlane.xlu0 %1608
        %v1610 = vrcp.pop %v1606
        %v1611 = vrcp.pop %v1609
        %v1612 = vmul.f32 %v1601, %v1610
        %v1613 = vmul.f32 %v1603, %v1611
        %1614 = vrot.lane.b32.xlu0 %v893, 32
        %v1615 = vpop.permute.xlu0 %1614
        %1616 = vrot.lane.b32.xlu0 %v898, 32
        %v1617 = vpop.permute.xlu0 %1616
        %v1621 = vsel %vm995, %v1612, 0
        %v1624 = vsel %vm995, %v1613, 0
        %1626 = vmatprep.subr.mxu0 0.0
        %1627 = vmatpush1.msra.mxu0 %v1615
        %1628 = vmatprep.subr.mxu0 0.0
        %1629 = vmatpush1.msra.mxu0 %v1617
        %1630 = vmatprep.subr.mxu0 0.0
        %1631 = vmatpush1.msra.mxu0 0.0
        %1632 = vmatprep.subr.mxu0 0.0
        %1633 = vmatpush1.msra.mxu0 0.0
        %1634 = vmatprep.subr.mxu0 0.0
        %1635 = vmatpush1.msra.mxu0 0.0
        %1636 = vmatprep.subr.mxu0 0.0
        %1637 = vmatpush1.msra.mxu0 0.0
        %1638 = vmatprep.subr.mxu0 0.0
        %1639 = vmatpush1.msra.mxu0 0.0
        %1640 = vmatprep.subr.mxu0 0.0
        %1641 = vmatpush1.msra.mxu0 0.0
        %1642 = vmatprep.subr.mxu0 0.0
        %1643 = vmatpush1.msra.mxu0 0.0
        %1644 = vmatprep.subr.mxu0 0.0
        %1645 = vmatpush1.msra.mxu0 0.0
        %1646 = vmatprep.subr.mxu0 0.0
        %1647 = vmatpush1.msra.mxu0 0.0
        %1648 = vmatprep.subr.mxu0 0.0
        %1649 = vmatpush1.msra.mxu0 0.0
        %1650 = vmatprep.subr.mxu0 0.0
        %1651 = vmatpush1.msra.mxu0 0.0
        %1652 = vmatprep.subr.mxu0 0.0
        %1653 = vmatpush1.msra.mxu0 0.0
        %1654 = vmatprep.subr.mxu0 0.0
        %1655 = vmatpush1.msra.mxu0 0.0
        %1656 = vmatprep.subr.mxu0 0.0
        %1657 = vmatpush1.msra.mxu0 0.0
        %1658 = vmatprep.subr.mxu0 0.0
        %1659 = vmatpush1.msra.mxu0 0.0
        %1660 = vmatprep.subr.mxu0 0.0
        %1661 = vmatpush1.msra.mxu0 0.0
        %1662 = vmatprep.subr.mxu0 0.0
        %1663 = vmatpush1.msra.mxu0 0.0
        %1664 = vmatprep.subr.mxu0 0.0
        %1665 = vmatpush1.msra.mxu0 0.0
        %1666 = vmatprep.subr.mxu0 0.0
        %1667 = vmatpush1.msra.mxu0 0.0
        %1668 = vmatprep.subr.mxu0 0.0
        %1669 = vmatpush1.msra.mxu0 0.0
        %1670 = vmatprep.subr.mxu0 0.0
        %1671 = vmatpush1.msra.mxu0 0.0
        %1672 = vmatprep.subr.mxu0 0.0
        %1673 = vmatpush1.msra.mxu0 0.0
        %1674 = vmatprep.subr.mxu0 0.0
        %1675 = vmatpush1.msra.mxu0 0.0
        %1676 = vmatprep.subr.mxu0 0.0
        %1677 = vmatpush1.msra.mxu0 0.0
        %1678 = vmatprep.subr.mxu0 0.0
        %1679 = vmatpush1.msra.mxu0 0.0
        %1680 = vmatprep.subr.mxu0 0.0
        %1681 = vmatpush1.msra.mxu0 0.0
        %1682 = vmatprep.subr.mxu0 0.0
        %1683 = vmatpush1.msra.mxu0 0.0
        %1684 = vmatprep.subr.mxu0 0.0
        %1685 = vmatpush1.msra.mxu0 0.0
        %1686 = vmatprep.subr.mxu0 0.0
        %1687 = vmatpush1.msra.mxu0 0.0
        %1688 = vmatprep.subr.mxu0 0.0
        %1689 = vmatpush1.msra.mxu0 0.0
        %1690 = vmatprep.mubr.f32.mxu0 0.0
        %1691 = vmatmul.mubr.f32.gmra.mrb[0].mxu0 %v1621
        %v1692 = vpop.f32.mrb[0].mxu0
        %v1693 = vadd.f32 0.0, %v1692
        %v1694 = vpop.f32.mrb[0].mxu0
        %1695 = vmatprep.mubr.f32.mxu0 0.0
        %1696 = vmatmul.mubr.f32.gmra.mrb[0].mxu0 %v1624
        %v1697 = vpop.f32.mrb[0].mxu0
        %v1698 = vadd.f32 0.0, %v1697
        %v1699 = vpop.f32.mrb[0].mxu0
        %1700 = vdwg.mxu0
        %1703 = vrot.lane.b32.xlu0 %v1293, 32
        %v1704 = vpop.permute.xlu0 %1703
        %1705 = vrot.lane.b32.xlu0 %v1298, 32
        %v1706 = vpop.permute.xlu0 %1705
        %1711 = vrot.lane.b32.xlu0 %v1493, 64
        %v1712 = vpop.permute.xlu0 %1711
        %1713 = vrot.lane.b32.xlu0 %v1498, 64
        %v1714 = vpop.permute.xlu0 %1713
        %1719 = vrot.lane.b32.xlu0 %v1693, 96
        %v1720 = vpop.permute.xlu0 %1719
        %1721 = vrot.lane.b32.xlu0 %v1698, 96
        %v1722 = vpop.permute.xlu0 %1721
        %v1725 = vsel %vm907, %v1091, %v1704
        %v1726 = vsel %vm907, %v1096, %v1706
        %vm1727 = vcmask 523264
        %v1728 = vsel %vm1727, %v1725, %v1712
        %v1729 = vsel %vm1727, %v1726, %v1714
        %vm1730 = vcmask 785408
        %v1731 = vsel %vm1730, %v1728, %v1720
        %v1732 = vsel %vm1730, %v1729, %v1722
        %v1734 = vlaneseq
        %v1735 = vshrl.u32 %v1734, 7
        %v1736 = vsub.s32 0, %v1735
        %v1737 = vrot.slane %v648, %v1736
        %1739 = vmatprep.subr.mxu0 0.0
        %1740 = vmatpush1.msra.mxu0 %v629
        %1741 = vmatprep.subr.mxu0 0.0
        %1742 = vmatpush1.msra.mxu0 %v630
        %1743 = vmatprep.subr.mxu0 0.0
        %1744 = vmatpush1.msra.mxu0 %v631
        %1745 = vmatprep.subr.mxu0 0.0
        %1746 = vmatpush1.msra.mxu0 %v632
        %1747 = vmatprep.subr.mxu0 0.0
        %1748 = vmatpush1.msra.mxu0 %v633
        %1749 = vmatprep.subr.mxu0 0.0
        %1750 = vmatpush1.msra.mxu0 %v634
        %1751 = vmatprep.subr.mxu0 0.0
        %1752 = vmatpush1.msra.mxu0 %v635
        %1753 = vmatprep.subr.mxu0 0.0
        %1754 = vmatpush1.msra.mxu0 %v636
        %1755 = vmatprep.subr.mxu0 0.0
        %1756 = vmatpush1.msra.mxu0 %v637
        %1757 = vmatprep.subr.mxu0 0.0
        %1758 = vmatpush1.msra.mxu0 %v638
        %1759 = vmatprep.subr.mxu0 0.0
        %1760 = vmatpush1.msra.mxu0 %v639
        %1761 = vmatprep.subr.mxu0 0.0
        %1762 = vmatpush1.msra.mxu0 %v640
        %1763 = vmatprep.subr.mxu0 0.0
        %1764 = vmatpush1.msra.mxu0 %v641
        %1765 = vmatprep.subr.mxu0 0.0
        %1766 = vmatpush1.msra.mxu0 %v642
        %1767 = vmatprep.subr.mxu0 0.0
        %1768 = vmatpush1.msra.mxu0 %v643
        %1769 = vmatprep.subr.mxu0 0.0
        %1770 = vmatpush1.msra.mxu0 %v644
        %1771 = vmatprep.subr.mxu0 0.0
        %1772 = vmatpush1.msra.mxu0 0.0
        %1773 = vmatprep.subr.mxu0 0.0
        %1774 = vmatpush1.msra.mxu0 0.0
        %1775 = vmatprep.subr.mxu0 0.0
        %1776 = vmatpush1.msra.mxu0 0.0
        %1777 = vmatprep.subr.mxu0 0.0
        %1778 = vmatpush1.msra.mxu0 0.0
        %1779 = vmatprep.subr.mxu0 0.0
        %1780 = vmatpush1.msra.mxu0 0.0
        %1781 = vmatprep.subr.mxu0 0.0
        %1782 = vmatpush1.msra.mxu0 0.0
        %1783 = vmatprep.subr.mxu0 0.0
        %1784 = vmatpush1.msra.mxu0 0.0
        %1785 = vmatprep.subr.mxu0 0.0
        %1786 = vmatpush1.msra.mxu0 0.0
        %1787 = vmatprep.subr.mxu0 0.0
        %1788 = vmatpush1.msra.mxu0 0.0
        %1789 = vmatprep.subr.mxu0 0.0
        %1790 = vmatpush1.msra.mxu0 0.0
        %1791 = vmatprep.subr.mxu0 0.0
        %1792 = vmatpush1.msra.mxu0 0.0
        %1793 = vmatprep.subr.mxu0 0.0
        %1794 = vmatpush1.msra.mxu0 0.0
        %1795 = vmatprep.subr.mxu0 0.0
        %1796 = vmatpush1.msra.mxu0 0.0
        %1797 = vmatprep.subr.mxu0 0.0
        %1798 = vmatpush1.msra.mxu0 0.0
        %1799 = vmatprep.subr.mxu0 0.0
        %1800 = vmatpush1.msra.mxu0 0.0
        %1801 = vmatprep.subr.mxu0 0.0
        %1802 = vmatpush1.msra.mxu0 0.0
        %1803 = vmatprep.mubr.f32.mxu0 0.0
        %1804 = vmatmul.mubr.f32.gmra.mrb[0].mxu0 %v1731
        %v1805 = vpop.f32.mrb[0].mxu0
        %v1806 = vadd.f32 %v1737, %v1805
        %v1807 = vpop.f32.mrb[0].mxu0
        %1808 = vmatprep.mubr.f32.mxu0 0.0
        %1809 = vmatmul.mubr.f32.gmra.mrb[0].mxu0 %v1732
        %v1810 = vpop.f32.mrb[0].mxu0
        %v1811 = vadd.f32 %v1737, %v1810
        %v1812 = vpop.f32.mrb[0].mxu0
        %1813 = vdwg.mxu0
        %1814 = vst [vmem:[%s577] sm:$0xff] %v1806
        %1815 = vst [vmem:[%s577 + $0x8] sm:$0xff] %v1811
        %s1816 = sand.u32 %s314, 1
        %s1817 = scalar_lea.sflag [#allocation4], %s1816
        %s1818 = sand.u32 %s314, 1
        %s1819 = smul.addr %s1818, 16
        %s1820 = scalar_lea.vmem [#allocation14], %s1819
        // Predicated region
        $region97: #{tpu_custom_call.1} parent=67 // pred_check
          %p1821 = pneg %p324
        $region98: #{tpu_custom_call.1} parent=67 // pred_check_branch
          %1823 = sbr.rel (%p1821) target = $region100
        $region99: #{tpu_custom_call.1} parent=67 // pred_region
          %s1825 = ssub.s32 256, 256
          %1826 = vsyncadd %s1817, %s1825
          %s1827 = smul.addr %s34, 2
          %s1828 = smul.addr %s1827, 128
          %s1829 = scalar_lea.hbm %s12, %s1828
          %s1830 = sshll.u32 %s1820, 4
          %s1831 = int_to_ptr.vmem [resolvable:$true] %s1830
          %1836 = dma.vmem_to_hbm [thread:$0]  %s1831, 256, %s1829, %s1817, 128, 128, 8
        $region100: #{tpu_custom_call.1} parent=67 // pred_fallthru
          _
      $region68: #{tpu_custom_call.1} parent=5 // pred_fallthru
        _
      %p1837 = scmp.le.s32.totalorder 2, %s29
      // Predicated region
      $region101: #{tpu_custom_call.1} parent=5 // pred_check
        %p1838 = pneg %p1837
      $region102: #{tpu_custom_call.1} parent=5 // pred_check_branch
        %1840 = sbr.rel (%p1838) target = $region104
      $region103: #{tpu_custom_call.1} parent=5 // pred_region
        %s1841 = ssub.s32 %s29, 2
        // Predicated region
        $region105: #{tpu_custom_call.1} parent=103 // pred_check
          %p1842 = pneg %p330
        $region106: #{tpu_custom_call.1} parent=103 // pred_check_branch
          %1844 = sbr.rel (%p1842) target = $region108
        $region107: #{tpu_custom_call.1} parent=103 // pred_region
          %s1845 = sand.u32 %s315, 1
          %s1846 = scalar_lea.sflag [#allocation4], %s1845
          %s1847 = sand.u32 %s315, 1
          %s1848 = smul.addr %s1847, 16
          %s1849 = scalar_lea.vmem [#allocation14], %s1848
          %1850 = dma.done %s1846, 256
        $region108: #{tpu_custom_call.1} parent=103 // pred_fallthru
          _
      $region104: #{tpu_custom_call.1} parent=5 // pred_fallthru
        _
    $region6: #{tpu_custom_call.1} parent=1 // loop_footer
      %s33 = sadd.s32 1, %s29
    $region7: #{tpu_custom_call.1} parent=1 // loop_footer_branch
      %28 = sbr.rel target = $region3
    $region8: #{tpu_custom_call.1} parent=1 // loop_exit
      _
    %1851 = vsyncpa [#allocation3], 1
    %s1852 = scalar_lea.sflag [#allocation3], 1
    %1853 = vsyncpa %s1852, 1
    %1854 = vsyncpa [#allocation6], 1
    %s1855 = scalar_lea.sflag [#allocation6], 1
    %1856 = vsyncpa %s1855, 1
    %1857 = vsyncpa [#allocation9], 1
    %1858 = vsyncpa [#allocation12], 1
    %1859 = vsyncpa [#allocation4], 1
    %s1860 = scalar_lea.sflag [#allocation4], 1
    %1861 = vsyncpa %s1860, 1

</llo_original>
